<compile_context>
chip_gen: v5e
topology: v5e:2x2
jax: 0.10.0
libtpu: 0.0.40
codegen_flags: <defaults>
</compile_context>

<pallas_src>
import functools

import jax
import jax.numpy as jnp
from jax import lax
from jax.experimental import pallas as pl
from jax.experimental.pallas import tpu as pltpu

# ---- small Mistral-like config (lane-dense widths) ----
SEQ = 16
HIDDEN = 128
N_HEADS = 4
N_KV_HEADS = 2
HEAD_DIM = 32
INTER = 256
EPS = 1e-6
SLIDING_WINDOW = 4096            # > SEQ -> pure causal for this toy config
GROUPS = N_HEADS // N_KV_HEADS
SCALE = 1.0 / (HEAD_DIM ** 0.5)
Q_DIM = N_HEADS * HEAD_DIM       # 128
KV_DIM = N_KV_HEADS * HEAD_DIM   # 64
QKV_BASE = Q_DIM + 2 * KV_DIM    # 256  columns: [ q | k | v ]
QKV_EXT = 2 * QKV_BASE           # 512  columns: [ q | k | v | rot(q) | rot(k) | 0 ]
K_OFF = Q_DIM
V_OFF = Q_DIM + KV_DIM
MASK_VALUE = -0.7 * float(jnp.finfo(jnp.float32).max)


# ---------------- fused decoder-layer kernel ----------------

def _rms(x, w):
    """f32 RMSNorm."""
    var = jnp.mean(x * x, axis=-1, keepdims=True)
    return x * lax.rsqrt(var + EPS) * w


def _fused_layer_kernel(has_residual, *refs):
    if has_residual:
        (hid_ref, res_ref, cos_ref, sin_ref, in_ln_ref, post_ln_ref,
         w_qkv_ref, w_o_ref, w_gate_up_ref, w_down_ref,
         out_ref, res_out_ref, attn_scr) = refs
    else:
        (hid_ref, cos_ref, sin_ref, in_ln_ref, post_ln_ref,
         w_qkv_ref, w_o_ref, w_gate_up_ref, w_down_ref,
         out_ref, res_out_ref, attn_scr) = refs
        res_ref = None

    # ---- input layernorm (optionally fused residual add) ----
    x = hid_ref[...].astype(jnp.float32)
    if has_residual:
        x = x + res_ref[...].astype(jnp.float32)          # new residual
    h = _rms(x, in_ln_ref[...].astype(jnp.float32)).astype(jnp.bfloat16)

    # ---- qkv (+ pre-rotated copies) projection: ONE wide MXU dot ----
    qkv = jnp.dot(h, w_qkv_ref[...],
                  preferred_element_type=jnp.float32)      # [SEQ, QKV_EXT]

    # ---- RoPE as a single full-lane-width FMA.
    # rotate_half lives in the weight columns (exact signed column perm),
    # the attention scale lives in the q-blocks of cos/sin, and the v block
    # has cos=1 / sin=0 / rot-cols=0 so it passes through unchanged.
    base = qkv[:, :QKV_BASE]                               # [SEQ, 256]  q|k|v
    rot = qkv[:, QKV_BASE:]                                # [SEQ, 256]  rot(q)|rot(k)|0
    roped = base * cos_ref[...] + rot * sin_ref[...]       # [SEQ, 256] f32

    # ---- causal + sliding-window mask for GROUPS stacked query heads ----
    r = lax.broadcasted_iota(jnp.int32, (GROUPS * SEQ, SEQ), 0)
    kj = lax.broadcasted_iota(jnp.int32, (GROUPS * SEQ, SEQ), 1)
    qpos = lax.rem(r, SEQ)
    mask_g = (kj <= qpos) & ((qpos - kj) < SLIDING_WINDOW)

    # ---- GQA attention: one QK^T dot + one PV dot per KV head ----
    for g in range(N_KV_HEADS):                            # unrolled at trace time
        k_g = roped[:, K_OFF + g * HEAD_DIM:
                    K_OFF + (g + 1) * HEAD_DIM].astype(jnp.bfloat16)
        v_g = roped[:, V_OFF + g * HEAD_DIM:
                    V_OFF + (g + 1) * HEAD_DIM].astype(jnp.bfloat16)
        # stack this group's query heads along rows -> taller, fewer dots
        q_g = jnp.concatenate(
            [roped[:, (g * GROUPS + j) * HEAD_DIM:(g * GROUPS + j + 1) * HEAD_DIM]
             for j in range(GROUPS)], axis=0).astype(jnp.bfloat16)  # [GROUPS*SEQ, HD]

        s = lax.dot_general(q_g, k_g, (((1,), (1,)), ((), ())),
                            preferred_element_type=jnp.float32)     # [GROUPS*SEQ, SEQ]
        s = jnp.where(mask_g, s, MASK_VALUE)
        m = jnp.max(s, axis=-1, keepdims=True)
        p = jnp.exp(s - m)
        inv = pl.reciprocal(jnp.sum(p, axis=-1, keepdims=True), approx=True)
        o_g = jnp.dot((p * inv).astype(jnp.bfloat16), v_g,
                      preferred_element_type=jnp.float32)            # [GROUPS*SEQ, HD]

        # scatter straight into the lane-dense attention scratch (no concat)
        for j in range(GROUPS):
            hq = g * GROUPS + j
            attn_scr[:, hq * HEAD_DIM:(hq + 1) * HEAD_DIM] = o_g[j * SEQ:(j + 1) * SEQ, :]

    attn_out = jnp.dot(attn_scr[...].astype(jnp.bfloat16), w_o_ref[...],
                       preferred_element_type=jnp.float32)           # [SEQ, HIDDEN]

    # ---- post-attention layernorm (fused residual add) ----
    res2 = x + attn_out
    res_out_ref[...] = res2.astype(res_out_ref.dtype)
    h2 = _rms(res2, post_ln_ref[...].astype(jnp.float32)).astype(jnp.bfloat16)

    # ---- MLP: fused gate|up dot, SiLU(gate)*up (EUP reciprocal), down proj ----
    gu = jnp.dot(h2, w_gate_up_ref[...],
                 preferred_element_type=jnp.float32)                 # [SEQ, 2*INTER]
    gate = gu[:, :INTER]
    up = gu[:, INTER:]
    act = gate * pl.reciprocal(1.0 + jnp.exp(-gate), approx=True) * up
    out = jnp.dot(act.astype(jnp.bfloat16), w_down_ref[...],
                  preferred_element_type=jnp.float32)
    out_ref[...] = out.astype(out_ref.dtype)


# ---------------- one-time host-side parameter / table prep ----------------

def _rotate_half_cols(w):
    """Column-permute W (per head) so that  h @ result == rotate_half(h @ W).

    Exact: only a signed permutation of bf16 columns, no rounding."""
    half = HEAD_DIM // 2
    blocks = []
    for hd in range(w.shape[1] // HEAD_DIM):
        b = w[:, hd * HEAD_DIM:(hd + 1) * HEAD_DIM]
        blocks.append(jnp.concatenate([-b[:, half:], b[:, :half]], axis=1))
    return jnp.concatenate(blocks, axis=1)


def prepare_layer_params(params):
    """Fuse the per-layer weights into the kernel layout (one-time, host side)."""
    w_q = params['w_qkv'][:, :Q_DIM]
    w_k = params['w_qkv'][:, Q_DIM:Q_DIM + KV_DIM]
    w_v = params['w_qkv'][:, Q_DIM + KV_DIM:]
    w_qkv_ext = jnp.concatenate(
        [w_q, w_k, w_v,
         _rotate_half_cols(w_q), _rotate_half_cols(w_k),
         jnp.zeros((w_q.shape[0], KV_DIM), w_q.dtype)], axis=1)       # [HIDDEN, QKV_EXT]
    w_gate_up = jnp.concatenate([params['w_gate'], params['w_up']], axis=1)
    return dict(input_ln=params['input_ln'], post_ln=params['post_ln'],
                w_qkv_ext=w_qkv_ext, w_o=params['w_o'],
                w_gate_up=w_gate_up, w_down=params['w_down'])


def prepare_rope_tables(cos, sin):
    """Tile cos/sin to the q|k|v column layout; fold the attention scale into q."""
    ones = jnp.ones_like(cos)
    zeros = jnp.zeros_like(sin)
    cos_full = jnp.concatenate([cos * SCALE] * N_HEADS + [cos] * N_KV_HEADS
                               + [ones] * N_KV_HEADS, axis=1).astype(jnp.float32)
    sin_full = jnp.concatenate([sin * SCALE] * N_HEADS + [sin] * N_KV_HEADS
                               + [zeros] * N_KV_HEADS, axis=1).astype(jnp.float32)
    return cos_full, sin_full                                         # [SEQ, QKV_BASE]


# ---------------- wrapper ----------------

def mistral_decoder_layer(hidden, cos_full, sin_full, kparams, residual=None):
    """One MistralDecoderLayer forward; returns (mlp_out, new_residual)."""
    has_res = residual is not None
    inputs = [hidden]
    if has_res:
        inputs.append(residual)
    inputs += [cos_full, sin_full,
               kparams['input_ln'], kparams['post_ln'],
               kparams['w_qkv_ext'], kparams['w_o'],
               kparams['w_gate_up'], kparams['w_down']]

    flops = (2 * SEQ * HIDDEN * QKV_EXT                       # qkv (+rot) proj
             + 2 * N_KV_HEADS * (GROUPS * SEQ) * SEQ * HEAD_DIM * 2   # qk + pv
             + 2 * SEQ * Q_DIM * HIDDEN                       # o proj
             + 2 * SEQ * HIDDEN * 2 * INTER                   # gate_up
             + 2 * SEQ * INTER * HIDDEN)                      # down
    transcendentals = N_HEADS * SEQ * SEQ + SEQ * INTER
    bytes_accessed = (sum(int(a.size) * a.dtype.itemsize for a in inputs)
                      + 2 * SEQ * HIDDEN * 4)

    vmem = lambda: pl.BlockSpec(memory_space=pltpu.MemorySpace.VMEM)
    # TODO(synk): at real dims add a token-tile grid with
    # dimension_semantics=("parallel", ...) so v7x's 2 TensorCores share work.
    return pl.pallas_call(
        functools.partial(_fused_layer_kernel, has_res),
        out_shape=(jax.ShapeDtypeStruct((SEQ, HIDDEN), jnp.float32),
                   jax.ShapeDtypeStruct((SEQ, HIDDEN), jnp.float32)),
        in_specs=[vmem() for _ in inputs],
        out_specs=(vmem(), vmem()),
        scratch_shapes=[pltpu.VMEM((SEQ, Q_DIM), jnp.float32)],
        compiler_params=pltpu.CompilerParams(vmem_limit_bytes=32 * 1024 * 1024),
        cost_estimate=pl.CostEstimate(flops=flops,
                                      transcendentals=transcendentals,
                                      bytes_accessed=bytes_accessed),
    )(*inputs)


# ---------------- pure-JAX reference (mirrors kernel's mixed precision) ----------------

def ref_decoder_layer(hidden, cos, sin, params, residual=None):
    def mm(a, b):
        return jnp.dot(a.astype(jnp.bfloat16), b.astype(jnp.bfloat16),
                       preferred_element_type=jnp.float32)

    def rms(x, w):
        var = jnp.mean(x * x, axis=-1, keepdims=True)
        return x * lax.rsqrt(var + EPS) * w

    x = hidden.astype(jnp.float32)
    if residual is not None:
        x = x + residual.astype(jnp.float32)
    h = rms(x, params['input_ln'].astype(jnp.float32)[0])

    qkv = mm(h, params['w_qkv'])
    q = qkv[:, :Q_DIM].reshape(SEQ, N_HEADS, HEAD_DIM)
    k = qkv[:, Q_DIM:Q_DIM + KV_DIM].reshape(SEQ, N_KV_HEADS, HEAD_DIM)
    v = qkv[:, Q_DIM + KV_DIM:].reshape(SEQ, N_KV_HEADS, HEAD_DIM)

    def rope(xh):
        half = HEAD_DIM // 2
        x1, x2 = xh[..., :half], xh[..., half:]
        rot = jnp.concatenate([-x2, x1], axis=-1)
        return xh * cos[:, None, :] + rot * sin[:, None, :]

    q, k = rope(q), rope(k)
    k_rep = jnp.repeat(k, GROUPS, axis=1)
    v_rep = jnp.repeat(v, GROUPS, axis=1)
    s = jnp.einsum('qhd,khd->hqk', q.astype(jnp.bfloat16), k_rep.astype(jnp.bfloat16),
                   preferred_element_type=jnp.float32) * SCALE
    qi = jnp.arange(SEQ)[:, None]
    kj = jnp.arange(SEQ)[None, :]
    mask = (kj <= qi) & ((qi - kj) < SLIDING_WINDOW)
    s = jnp.where(mask[None], s, MASK_VALUE)
    p = jax.nn.softmax(s, axis=-1)
    attn = jnp.einsum('hqk,khd->qhd', p.astype(jnp.bfloat16), v_rep.astype(jnp.bfloat16),
                      preferred_element_type=jnp.float32).reshape(SEQ, Q_DIM)
    attn_out = mm(attn, params['w_o'])

    res2 = x + attn_out
    h2 = rms(res2, params['post_ln'].astype(jnp.float32)[0])
    gate = mm(h2, params['w_gate'])
    up = mm(h2, params['w_up'])
    act = jax.nn.silu(gate) * up
    out = mm(act, params['w_down'])
    return out, res2


# ---------------- main ----------------

if __name__ == "__main__":
    key = jax.random.PRNGKey(0)
    ks = jax.random.split(key, 9)

    def w(k, fan_in, fan_out):
        return (jax.random.normal(k, (fan_in, fan_out), jnp.float32)
                / jnp.sqrt(fan_in)).astype(jnp.bfloat16)

    params = {
        'input_ln':  (1.0 + 0.1 * jax.random.normal(ks[0], (1, HIDDEN), jnp.float32)),
        'post_ln':   (1.0 + 0.1 * jax.random.normal(ks[1], (1, HIDDEN), jnp.float32)),
        # weights stored [in, out] (torch weight transposed), bf16 for the MXU
        'w_qkv':     w(ks[2], HIDDEN, Q_DIM + 2 * KV_DIM),
        'w_o':       w(ks[3], Q_DIM, HIDDEN),
        'w_gate':    w(ks[4], HIDDEN, INTER),
        'w_up':      w(ks[5], HIDDEN, INTER),
        'w_down':    w(ks[6], INTER, HIDDEN),
    }

    hidden = jax.random.normal(ks[7], (SEQ, HIDDEN), jnp.float32)

    # rotary position embeddings, [SEQ, HEAD_DIM]
    pos = jnp.arange(SEQ, dtype=jnp.float32)
    inv_freq = 1.0 / (10000.0 ** (jnp.arange(0, HEAD_DIM, 2, dtype=jnp.float32) / HEAD_DIM))
    freqs = pos[:, None] * inv_freq[None, :]
    emb = jnp.concatenate([freqs, freqs], axis=-1)
    cos, sin = jnp.cos(emb), jnp.sin(emb)

    # one-time host-side weight fusion + RoPE table tiling
    kparams = prepare_layer_params(params)
    cos_full, sin_full = prepare_rope_tables(cos, sin)

    # layer 0: residual is None
    out1, res1 = mistral_decoder_layer(hidden, cos_full, sin_full, kparams, residual=None)
    out1, res1 = jax.block_until_ready(out1), jax.block_until_ready(res1)
    ref_out1, ref_res1 = ref_decoder_layer(hidden, cos, sin, params, residual=None)
    assert jnp.allclose(out1, ref_out1, atol=3e-2, rtol=3e-2), "layer0 output mismatch"
    assert jnp.allclose(res1, ref_res1, atol=3e-2, rtol=3e-2), "layer0 residual mismatch"

    # layer 1: exercises the fused residual-add path (same weights fed again)
    out2, res2 = mistral_decoder_layer(out1, cos_full, sin_full, kparams, residual=res1)
    out2, res2 = jax.block_until_ready(out2), jax.block_until_ready(res2)
    ref_out2, ref_res2 = ref_decoder_layer(out1, cos, sin, params, residual=res1)
    assert jnp.allclose(out2, ref_out2, atol=3e-2, rtol=3e-2), "layer1 output mismatch"
    assert jnp.allclose(res2, ref_res2, atol=3e-2, rtol=3e-2), "layer1 residual mismatch"

    print("KERNEL_OK")
</pallas_src>

<mosaic_0001>
module attributes {stable_mosaic.version = 11 : i64} {
  func.func @_fused_layer_kernel(%arg0: memref<16x128xf32, #tpu.memory_space<vmem>>, %arg1: memref<16x256xf32, #tpu.memory_space<vmem>>, %arg2: memref<16x256xf32, #tpu.memory_space<vmem>>, %arg3: memref<1x128xf32, #tpu.memory_space<vmem>>, %arg4: memref<1x128xf32, #tpu.memory_space<vmem>>, %arg5: memref<128x512xbf16, #tpu.memory_space<vmem>>, %arg6: memref<128x128xbf16, #tpu.memory_space<vmem>>, %arg7: memref<128x512xbf16, #tpu.memory_space<vmem>>, %arg8: memref<256x128xbf16, #tpu.memory_space<vmem>>, %arg9: memref<16x128xf32, #tpu.memory_space<vmem>>, %arg10: memref<16x128xf32, #tpu.memory_space<vmem>>, %arg11: memref<16x128xf32, #tpu.memory_space<vmem>>) attributes {dimension_semantics = [], scalar_prefetch = 0 : i64, scratch_operands = 1 : i64, tpu.core_type = #tpu.core_type<tc>} {
    %c0 = arith.constant 0 : index
    %c0_0 = arith.constant 0 : index
    %0 = vector.load %arg0[%c0, %c0_0] : memref<16x128xf32, #tpu.memory_space<vmem>>, vector<16x128xf32>
    %c0_1 = arith.constant 0 : index
    %c0_2 = arith.constant 0 : index
    %1 = vector.load %arg3[%c0_1, %c0_2] : memref<1x128xf32, #tpu.memory_space<vmem>>, vector<1x128xf32>
    %2 = arith.mulf %0, %0 : vector<16x128xf32>
    %cst = arith.constant dense<0.000000e+00> : vector<16xf32>
    %3 = vector.multi_reduction <add>, %2, %cst [1] : vector<16x128xf32> to vector<16xf32>
    %4 = vector.shape_cast %3 : vector<16xf32> to vector<16x1xf32>
    %cst_3 = arith.constant 1.280000e+02 : f32
    %5 = vector.broadcast %cst_3 : f32 to vector<16x1xf32>
    %6 = arith.divf %4, %5 : vector<16x1xf32>
    %cst_4 = arith.constant 9.99999997E-7 : f32
    %7 = vector.broadcast %cst_4 : f32 to vector<16x1xf32>
    %8 = arith.addf %6, %7 : vector<16x1xf32>
    %9 = math.rsqrt %8 : vector<16x1xf32>
    %10 = vector.broadcast %9 : vector<16x1xf32> to vector<16x128xf32>
    %11 = arith.mulf %0, %10 : vector<16x128xf32>
    %12 = vector.broadcast %1 : vector<1x128xf32> to vector<16x128xf32>
    %13 = arith.mulf %11, %12 : vector<16x128xf32>
    %14 = arith.truncf %13 : vector<16x128xf32> to vector<16x128xbf16>
    %c0_5 = arith.constant 0 : index
    %c0_6 = arith.constant 0 : index
    %15 = vector.load %arg5[%c0_5, %c0_6] : memref<128x512xbf16, #tpu.memory_space<vmem>>, vector<128x512xbf16>
    %cst_7 = arith.constant dense<0.000000e+00> : vector<16x512xf32>
    %16 = tpu.matmul %14, %15, %cst_7 {dimension_numbers = #tpu.dot_dimension_numbers<[1], [0], [0], [1], [0, 0, 1, 1], [], []>} : vector<16x128xbf16>, vector<128x512xbf16>, vector<16x512xf32> -> vector<16x512xf32>
    %17 = vector.extract_strided_slice %16 {offsets = [0, 0], sizes = [16, 256], strides = [1, 1]} : vector<16x512xf32> to vector<16x256xf32>
    %18 = vector.extract_strided_slice %16 {offsets = [0, 256], sizes = [16, 256], strides = [1, 1]} : vector<16x512xf32> to vector<16x256xf32>
    %c0_8 = arith.constant 0 : index
    %c0_9 = arith.constant 0 : index
    %19 = vector.load %arg1[%c0_8, %c0_9] : memref<16x256xf32, #tpu.memory_space<vmem>>, vector<16x256xf32>
    %20 = arith.mulf %17, %19 : vector<16x256xf32>
    %c0_10 = arith.constant 0 : index
    %c0_11 = arith.constant 0 : index
    %21 = vector.load %arg2[%c0_10, %c0_11] : memref<16x256xf32, #tpu.memory_space<vmem>>, vector<16x256xf32>
    %22 = arith.mulf %18, %21 : vector<16x256xf32>
    %23 = arith.addf %20, %22 : vector<16x256xf32>
    %24 = tpu.iota {dimensions = array<i32: 0>} : vector<32x16xi32>
    %25 = tpu.iota {dimensions = array<i32: 1>} : vector<32x16xi32>
    %c16_i32 = arith.constant 16 : i32
    %26 = vector.broadcast %c16_i32 : i32 to vector<32x16xi32>
    %27 = arith.remsi %24, %26 : vector<32x16xi32>
    %28 = arith.cmpi sle, %25, %27 : vector<32x16xi32>
    %29 = arith.subi %27, %25 : vector<32x16xi32>
    %c4096_i32 = arith.constant 4096 : i32
    %30 = vector.broadcast %c4096_i32 : i32 to vector<32x16xi32>
    %31 = arith.cmpi slt, %29, %30 : vector<32x16xi32>
    %32 = arith.andi %28, %31 : vector<32x16xi1>
    %33 = vector.extract_strided_slice %23 {offsets = [0, 128], sizes = [16, 32], strides = [1, 1]} : vector<16x256xf32> to vector<16x32xf32>
    %34 = arith.truncf %33 : vector<16x32xf32> to vector<16x32xbf16>
    %35 = vector.extract_strided_slice %23 {offsets = [0, 192], sizes = [16, 32], strides = [1, 1]} : vector<16x256xf32> to vector<16x32xf32>
    %36 = arith.truncf %35 : vector<16x32xf32> to vector<16x32xbf16>
    %37 = vector.extract_strided_slice %23 {offsets = [0, 0], sizes = [16, 32], strides = [1, 1]} : vector<16x256xf32> to vector<16x32xf32>
    %38 = vector.extract_strided_slice %23 {offsets = [0, 32], sizes = [16, 32], strides = [1, 1]} : vector<16x256xf32> to vector<16x32xf32>
    %39 = tpu.concatenate %37, %38 in 0 : vector<16x32xf32>, vector<16x32xf32> -> vector<32x32xf32>
    %40 = arith.truncf %39 : vector<32x32xf32> to vector<32x32xbf16>
    %cst_12 = arith.constant dense<0.000000e+00> : vector<32x16xf32>
    %41 = tpu.matmul %40, %34, %cst_12 {dimension_numbers = #tpu.dot_dimension_numbers<[1], [1], [0], [0], [0, 0, 1, 0], [], []>} : vector<32x32xbf16>, vector<16x32xbf16>, vector<32x16xf32> -> vector<32x16xf32>
    %cst_13 = arith.constant -2.38197633E+38 : f32
    %42 = vector.broadcast %cst_13 : f32 to vector<32x16xf32>
    %43 = arith.select %32, %41, %42 : vector<32x16xi1>, vector<32x16xf32>
    %cst_14 = arith.constant dense<0xFF800000> : vector<32xf32>
    %44 = vector.multi_reduction <maximumf>, %43, %cst_14 [1] : vector<32x16xf32> to vector<32xf32>
    %45 = vector.shape_cast %44 : vector<32xf32> to vector<32x1xf32>
    %46 = vector.broadcast %45 : vector<32x1xf32> to vector<32x16xf32>
    %47 = arith.subf %43, %46 : vector<32x16xf32>
    %48 = math.exp %47 : vector<32x16xf32>
    %cst_15 = arith.constant dense<0.000000e+00> : vector<32xf32>
    %49 = vector.multi_reduction <add>, %48, %cst_15 [1] : vector<32x16xf32> to vector<32xf32>
    %50 = vector.shape_cast %49 : vector<32xf32> to vector<32x1xf32>
    %51 = tpu.reciprocal %50 {approx = true} : vector<32x1xf32> -> vector<32x1xf32>
    %52 = vector.broadcast %51 : vector<32x1xf32> to vector<32x16xf32>
    %53 = arith.mulf %48, %52 : vector<32x16xf32>
    %54 = arith.truncf %53 : vector<32x16xf32> to vector<32x16xbf16>
    %cst_16 = arith.constant dense<0.000000e+00> : vector<32x32xf32>
    %55 = tpu.matmul %54, %36, %cst_16 {dimension_numbers = #tpu.dot_dimension_numbers<[1], [0], [0], [1], [0, 0, 1, 1], [], []>} : vector<32x16xbf16>, vector<16x32xbf16>, vector<32x32xf32> -> vector<32x32xf32>
    %56 = vector.extract_strided_slice %55 {offsets = [0, 0], sizes = [16, 32], strides = [1, 1]} : vector<32x32xf32> to vector<16x32xf32>
    %c0_17 = arith.constant 0 : index
    %c0_18 = arith.constant 0 : index
    %57 = vector.load %arg11[%c0_17, %c0_18] : memref<16x128xf32, #tpu.memory_space<vmem>>, vector<16x32xf32>
    tpu.vector_store %arg11[%c0_17, %c0_18], %56 {strides = array<i32>} : memref<16x128xf32, #tpu.memory_space<vmem>>, vector<16x32xf32>,
    %58 = vector.extract_strided_slice %55 {offsets = [16, 0], sizes = [16, 32], strides = [1, 1]} : vector<32x32xf32> to vector<16x32xf32>
    %c0_19 = arith.constant 0 : index
    %c32 = arith.constant 32 : index
    %59 = vector.load %arg11[%c0_19, %c32] : memref<16x128xf32, #tpu.memory_space<vmem>>, vector<16x32xf32>
    tpu.vector_store %arg11[%c0_19, %c32], %58 {strides = array<i32>} : memref<16x128xf32, #tpu.memory_space<vmem>>, vector<16x32xf32>,
    %60 = vector.extract_strided_slice %23 {offsets = [0, 160], sizes = [16, 32], strides = [1, 1]} : vector<16x256xf32> to vector<16x32xf32>
    %61 = arith.truncf %60 : vector<16x32xf32> to vector<16x32xbf16>
    %62 = vector.extract_strided_slice %23 {offsets = [0, 224], sizes = [16, 32], strides = [1, 1]} : vector<16x256xf32> to vector<16x32xf32>
    %63 = arith.truncf %62 : vector<16x32xf32> to vector<16x32xbf16>
    %64 = vector.extract_strided_slice %23 {offsets = [0, 64], sizes = [16, 32], strides = [1, 1]} : vector<16x256xf32> to vector<16x32xf32>
    %65 = vector.extract_strided_slice %23 {offsets = [0, 96], sizes = [16, 32], strides = [1, 1]} : vector<16x256xf32> to vector<16x32xf32>
    %66 = tpu.concatenate %64, %65 in 0 : vector<16x32xf32>, vector<16x32xf32> -> vector<32x32xf32>
    %67 = arith.truncf %66 : vector<32x32xf32> to vector<32x32xbf16>
    %cst_20 = arith.constant dense<0.000000e+00> : vector<32x16xf32>
    %68 = tpu.matmul %67, %61, %cst_20 {dimension_numbers = #tpu.dot_dimension_numbers<[1], [1], [0], [0], [0, 0, 1, 0], [], []>} : vector<32x32xbf16>, vector<16x32xbf16>, vector<32x16xf32> -> vector<32x16xf32>
    %cst_21 = arith.constant -2.38197633E+38 : f32
    %69 = vector.broadcast %cst_21 : f32 to vector<32x16xf32>
    %70 = arith.select %32, %68, %69 : vector<32x16xi1>, vector<32x16xf32>
    %cst_22 = arith.constant dense<0xFF800000> : vector<32xf32>
    %71 = vector.multi_reduction <maximumf>, %70, %cst_22 [1] : vector<32x16xf32> to vector<32xf32>
    %72 = vector.shape_cast %71 : vector<32xf32> to vector<32x1xf32>
    %73 = vector.broadcast %72 : vector<32x1xf32> to vector<32x16xf32>
    %74 = arith.subf %70, %73 : vector<32x16xf32>
    %75 = math.exp %74 : vector<32x16xf32>
    %cst_23 = arith.constant dense<0.000000e+00> : vector<32xf32>
    %76 = vector.multi_reduction <add>, %75, %cst_23 [1] : vector<32x16xf32> to vector<32xf32>
    %77 = vector.shape_cast %76 : vector<32xf32> to vector<32x1xf32>
    %78 = tpu.reciprocal %77 {approx = true} : vector<32x1xf32> -> vector<32x1xf32>
    %79 = vector.broadcast %78 : vector<32x1xf32> to vector<32x16xf32>
    %80 = arith.mulf %75, %79 : vector<32x16xf32>
    %81 = arith.truncf %80 : vector<32x16xf32> to vector<32x16xbf16>
    %cst_24 = arith.constant dense<0.000000e+00> : vector<32x32xf32>
    %82 = tpu.matmul %81, %63, %cst_24 {dimension_numbers = #tpu.dot_dimension_numbers<[1], [0], [0], [1], [0, 0, 1, 1], [], []>} : vector<32x16xbf16>, vector<16x32xbf16>, vector<32x32xf32> -> vector<32x32xf32>
    %83 = vector.extract_strided_slice %82 {offsets = [0, 0], sizes = [16, 32], strides = [1, 1]} : vector<32x32xf32> to vector<16x32xf32>
    %c0_25 = arith.constant 0 : index
    %c64 = arith.constant 64 : index
    %84 = vector.load %arg11[%c0_25, %c64] : memref<16x128xf32, #tpu.memory_space<vmem>>, vector<16x32xf32>
    tpu.vector_store %arg11[%c0_25, %c64], %83 {strides = array<i32>} : memref<16x128xf32, #tpu.memory_space<vmem>>, vector<16x32xf32>,
    %85 = vector.extract_strided_slice %82 {offsets = [16, 0], sizes = [16, 32], strides = [1, 1]} : vector<32x32xf32> to vector<16x32xf32>
    %c0_26 = arith.constant 0 : index
    %c96 = arith.constant 96 : index
    %86 = vector.load %arg11[%c0_26, %c96] : memref<16x128xf32, #tpu.memory_space<vmem>>, vector<16x32xf32>
    tpu.vector_store %arg11[%c0_26, %c96], %85 {strides = array<i32>} : memref<16x128xf32, #tpu.memory_space<vmem>>, vector<16x32xf32>,
    %c0_27 = arith.constant 0 : index
    %c0_28 = arith.constant 0 : index
    %87 = vector.load %arg11[%c0_27, %c0_28] : memref<16x128xf32, #tpu.memory_space<vmem>>, vector<16x128xf32>
    %88 = arith.truncf %87 : vector<16x128xf32> to vector<16x128xbf16>
    %c0_29 = arith.constant 0 : index
    %c0_30 = arith.constant 0 : index
    %89 = vector.load %arg6[%c0_29, %c0_30] : memref<128x128xbf16, #tpu.memory_space<vmem>>, vector<128x128xbf16>
    %cst_31 = arith.constant dense<0.000000e+00> : vector<16x128xf32>
    %90 = tpu.matmul %88, %89, %cst_31 {dimension_numbers = #tpu.dot_dimension_numbers<[1], [0], [0], [1], [0, 0, 1, 1], [], []>} : vector<16x128xbf16>, vector<128x128xbf16>, vector<16x128xf32> -> vector<16x128xf32>
    %91 = arith.addf %0, %90 : vector<16x128xf32>
    %c0_32 = arith.constant 0 : index
    %c0_33 = arith.constant 0 : index
    %92 = vector.load %arg10[%c0_32, %c0_33] : memref<16x128xf32, #tpu.memory_space<vmem>>, vector<16x128xf32>
    tpu.vector_store %arg10[%c0_32, %c0_33], %91 {strides = array<i32>} : memref<16x128xf32, #tpu.memory_space<vmem>>, vector<16x128xf32>,
    %c0_34 = arith.constant 0 : index
    %c0_35 = arith.constant 0 : index
    %93 = vector.load %arg4[%c0_34, %c0_35] : memref<1x128xf32, #tpu.memory_space<vmem>>, vector<1x128xf32>
    %94 = arith.mulf %91, %91 : vector<16x128xf32>
    %cst_36 = arith.constant dense<0.000000e+00> : vector<16xf32>
    %95 = vector.multi_reduction <add>, %94, %cst_36 [1] : vector<16x128xf32> to vector<16xf32>
    %96 = vector.shape_cast %95 : vector<16xf32> to vector<16x1xf32>
    %cst_37 = arith.constant 1.280000e+02 : f32
    %97 = vector.broadcast %cst_37 : f32 to vector<16x1xf32>
    %98 = arith.divf %96, %97 : vector<16x1xf32>
    %cst_38 = arith.constant 9.99999997E-7 : f32
    %99 = vector.broadcast %cst_38 : f32 to vector<16x1xf32>
    %100 = arith.addf %98, %99 : vector<16x1xf32>
    %101 = math.rsqrt %100 : vector<16x1xf32>
    %102 = vector.broadcast %101 : vector<16x1xf32> to vector<16x128xf32>
    %103 = arith.mulf %91, %102 : vector<16x128xf32>
    %104 = vector.broadcast %93 : vector<1x128xf32> to vector<16x128xf32>
    %105 = arith.mulf %103, %104 : vector<16x128xf32>
    %106 = arith.truncf %105 : vector<16x128xf32> to vector<16x128xbf16>
    %c0_39 = arith.constant 0 : index
    %c0_40 = arith.constant 0 : index
    %107 = vector.load %arg7[%c0_39, %c0_40] : memref<128x512xbf16, #tpu.memory_space<vmem>>, vector<128x512xbf16>
    %cst_41 = arith.constant dense<0.000000e+00> : vector<16x512xf32>
    %108 = tpu.matmul %106, %107, %cst_41 {dimension_numbers = #tpu.dot_dimension_numbers<[1], [0], [0], [1], [0, 0, 1, 1], [], []>} : vector<16x128xbf16>, vector<128x512xbf16>, vector<16x512xf32> -> vector<16x512xf32>
    %109 = vector.extract_strided_slice %108 {offsets = [0, 0], sizes = [16, 256], strides = [1, 1]} : vector<16x512xf32> to vector<16x256xf32>
    %110 = vector.extract_strided_slice %108 {offsets = [0, 256], sizes = [16, 256], strides = [1, 1]} : vector<16x512xf32> to vector<16x256xf32>
    %cst_42 = arith.constant 0.000000e+00 : f32
    %111 = vector.broadcast %cst_42 : f32 to vector<16x256xf32>
    %112 = arith.subf %111, %109 : vector<16x256xf32>
    %113 = math.exp %112 : vector<16x256xf32>
    %cst_43 = arith.constant 1.000000e+00 : f32
    %114 = vector.broadcast %cst_43 : f32 to vector<16x256xf32>
    %115 = arith.addf %114, %113 : vector<16x256xf32>
    %116 = tpu.reciprocal %115 {approx = true} : vector<16x256xf32> -> vector<16x256xf32>
    %117 = arith.mulf %109, %116 : vector<16x256xf32>
    %118 = arith.mulf %117, %110 : vector<16x256xf32>
    %119 = arith.truncf %118 : vector<16x256xf32> to vector<16x256xbf16>
    %c0_44 = arith.constant 0 : index
    %c0_45 = arith.constant 0 : index
    %120 = vector.load %arg8[%c0_44, %c0_45] : memref<256x128xbf16, #tpu.memory_space<vmem>>, vector<256x128xbf16>
    %cst_46 = arith.constant dense<0.000000e+00> : vector<16x128xf32>
    %121 = tpu.matmul %119, %120, %cst_46 {dimension_numbers = #tpu.dot_dimension_numbers<[1], [0], [0], [1], [0, 0, 1, 1], [], []>} : vector<16x256xbf16>, vector<256x128xbf16>, vector<16x128xf32> -> vector<16x128xf32>
    %c0_47 = arith.constant 0 : index
    %c0_48 = arith.constant 0 : index
    %122 = vector.load %arg9[%c0_47, %c0_48] : memref<16x128xf32, #tpu.memory_space<vmem>>, vector<16x128xf32>
    tpu.vector_store %arg9[%c0_47, %c0_48], %121 {strides = array<i32>} : memref<16x128xf32, #tpu.memory_space<vmem>>, vector<16x128xf32>,
    return
  }
}

</mosaic_0001>

<llo_original>
// kernel: tpu_custom_call.1
$region0: #{tpu_custom_call.1}
  #allocation0 [shape = 'u32[]', space=smem, size = 0x4, offset = 0x4, fixed_abs, tag = 'smem constant byte address 0x4 - core index']
  #allocation1 [shape = 'u32[72,128]{1,0:T(1,128)}', space=vmem, size = 0x9000, scoped, tag = 'internal scratch']
  #allocation2 [shape = 'f32[16,128]{1,0:T(8,128)}', space=vmem, size = 0x2000, scoped, tag = 'scratch operand']
  %s0 = inlined_call_operand.hbm [shape: f32[16,128], index: 0, kind: input, shape index: {}]
  %s1 = inlined_call_operand.hbm [shape: f32[16,256], index: 1, kind: input, shape index: {}]
  %s2 = inlined_call_operand.hbm [shape: f32[16,256], index: 2, kind: input, shape index: {}]
  %s3 = inlined_call_operand.vmem [shape: f32[1,128], index: 3, kind: input, shape index: {}]
  %s4 = inlined_call_operand.vmem [shape: f32[1,128], index: 4, kind: input, shape index: {}]
  %s5 = inlined_call_operand.hbm [shape: bf16[128,512], index: 5, kind: input, shape index: {}]
  %s6 = inlined_call_operand.hbm [shape: bf16[128,128], index: 6, kind: input, shape index: {}]
  %s7 = inlined_call_operand.hbm [shape: bf16[128,512], index: 7, kind: input, shape index: {}]
  %s8 = inlined_call_operand.hbm [shape: bf16[256,128], index: 8, kind: input, shape index: {}]
  %s9 = inlined_call_operand.hbm [shape: f32[16,128], index: 9, kind: output, shape index: {0}]
  %s10 = inlined_call_operand.hbm [shape: f32[16,128], index: 10, kind: output, shape index: {1}]
  %11 = xla_tuple %s9, %s10
  %s12 = sld [smem:[#allocation0]]
  $region82: #{tpu_custom_call.1} parent=0
    _
  %s14 = ssub.s32 1, %s12
  %s15 = scalar_select 0, %s14, %s12
  $region1: #{tpu_custom_call.1} parent=0
    #allocation3 [shape = 'u8[8192]{0}', space=vmem, size = 0x2000, scoped, tag = 'input window, operand 0, single buffered']
    #allocation4 [shape = 's32[1]{0}', space=sflag, size = 0x4, scoped, tag = 'scoped memory for tpu_custom_call.1']
    #allocation5 [shape = 's32[1]{0}', space=sflag, size = 0x4, scoped, tag = 'scoped memory for tpu_custom_call.1']
    #allocation6 [shape = 'u8[16384]{0}', space=vmem, size = 0x4000, scoped, tag = 'input window, operand 1, single buffered']
    #allocation7 [shape = 's32[1]{0}', space=sflag, size = 0x4, scoped, tag = 'scoped memory for tpu_custom_call.1']
    #allocation8 [shape = 'u8[16384]{0}', space=vmem, size = 0x4000, scoped, tag = 'input window, operand 2, single buffered']
    #allocation9 [shape = 'u8[131072]{0}', space=vmem, size = 0x20000, scoped, tag = 'input window, operand 5, single buffered']
    #allocation10 [shape = 's32[1]{0}', space=sflag, size = 0x4, scoped, tag = 'scoped memory for tpu_custom_call.1']
    #allocation11 [shape = 'u8[32768]{0}', space=vmem, size = 0x8000, scoped, tag = 'input window, operand 6, single buffered']
    #allocation12 [shape = 'u8[131072]{0}', space=vmem, size = 0x20000, scoped, tag = 'input window, operand 7, single buffered']
    #allocation13 [shape = 's32[1]{0}', space=sflag, size = 0x4, scoped, tag = 'scoped memory for tpu_custom_call.1']
    #allocation14 [shape = 'u8[65536]{0}', space=vmem, size = 0x10000, scoped, tag = 'input window, operand 8, single buffered']
    #allocation15 [shape = 'u8[8192]{0}', space=vmem, size = 0x2000, scoped, tag = 'output window, operand 0, single buffered']
    #allocation16 [shape = 'u8[8192]{0}', space=vmem, size = 0x2000, scoped, tag = 'output window, operand 1, single buffered']
    #allocation17 [shape = 's32[1]{0}', space=sflag, size = 0x4, scoped, tag = 'scoped memory for tpu_custom_call.1']
    %16 = vsyncpa [#allocation4], 0
    %17 = vsyncpa [#allocation7], 0
    %18 = vsyncpa [#allocation10], 0
    %19 = vsyncpa [#allocation13], 0
    %20 = vsyncpa [#allocation5], 0
    %21 = vsyncpa [#allocation17], 0
    // Predicated region
    $region2: #{tpu_custom_call.1} parent=1 // pred_check
      _
    $region3: #{tpu_custom_call.1} parent=1 // pred_check_branch
      %23 = sbr.rel (0) target = $region5
    $region4: #{tpu_custom_call.1} parent=1 // pred_region
      %25 = vsyncadd [#allocation4], 0
      %s26 = sshll.u32 %s0, 4
      %s27 = int_to_ptr.hbm [resolvable:$true] %s26
      %s28 = sshll.u32 [#allocation3], 4
      %s29 = int_to_ptr.vmem [resolvable:$true] %s28
      %34 = dma.hbm_to_vmem [thread:$0]  %s27, 256, %s29, [#allocation4], 128, 128, 8
    $region5: #{tpu_custom_call.1} parent=1 // pred_fallthru
      _
    // Predicated region
    $region6: #{tpu_custom_call.1} parent=1 // pred_check
      _
    $region7: #{tpu_custom_call.1} parent=1 // pred_check_branch
      %36 = sbr.rel (0) target = $region9
    $region8: #{tpu_custom_call.1} parent=1 // pred_region
      %38 = vsyncadd [#allocation7], 0
      %s39 = sshll.u32 %s1, 4
      %s40 = int_to_ptr.hbm [resolvable:$true] %s39
      %s41 = sshll.u32 [#allocation6], 4
      %s42 = int_to_ptr.vmem [resolvable:$true] %s41
      %47 = dma.hbm_to_vmem [thread:$0]  %s40, 512, %s42, [#allocation7], 256, 256, 16
    $region9: #{tpu_custom_call.1} parent=1 // pred_fallthru
      _
    // Predicated region
    $region10: #{tpu_custom_call.1} parent=1 // pred_check
      _
    $region11: #{tpu_custom_call.1} parent=1 // pred_check_branch
      %49 = sbr.rel (0) target = $region13
    $region12: #{tpu_custom_call.1} parent=1 // pred_region
      %51 = vsyncadd [#allocation7], 0
      %s52 = sshll.u32 %s2, 4
      %s53 = int_to_ptr.hbm [resolvable:$true] %s52
      %s54 = sshll.u32 [#allocation8], 4
      %s55 = int_to_ptr.vmem [resolvable:$true] %s54
      %60 = dma.hbm_to_vmem [thread:$0]  %s53, 512, %s55, [#allocation7], 256, 256, 16
    $region13: #{tpu_custom_call.1} parent=1 // pred_fallthru
      _
    // Predicated region
    $region14: #{tpu_custom_call.1} parent=1 // pred_check
      _
    $region15: #{tpu_custom_call.1} parent=1 // pred_check_branch
      %62 = sbr.rel (0) target = $region17
    $region16: #{tpu_custom_call.1} parent=1 // pred_region
      _
    $region17: #{tpu_custom_call.1} parent=1 // pred_fallthru
      _
    // Predicated region
    $region18: #{tpu_custom_call.1} parent=1 // pred_check
      _
    $region19: #{tpu_custom_call.1} parent=1 // pred_check_branch
      %64 = sbr.rel (0) target = $region21
    $region20: #{tpu_custom_call.1} parent=1 // pred_region
      _
    $region21: #{tpu_custom_call.1} parent=1 // pred_fallthru
      _
    // Predicated region
    $region22: #{tpu_custom_call.1} parent=1 // pred_check
      _
    $region23: #{tpu_custom_call.1} parent=1 // pred_check_branch
      %66 = sbr.rel (0) target = $region25
    $region24: #{tpu_custom_call.1} parent=1 // pred_region
      %68 = vsyncadd [#allocation10], 0
      %s69 = sshll.u32 %s5, 4
      %s70 = int_to_ptr.hbm [resolvable:$true] %s69
      %s71 = sshll.u32 [#allocation9], 4
      %s72 = int_to_ptr.vmem [resolvable:$true] %s71
      %77 = dma.hbm_to_vmem [thread:$0]  %s70, 4096, %s72, [#allocation10], 256, 256, 16
    $region25: #{tpu_custom_call.1} parent=1 // pred_fallthru
      _
    // Predicated region
    $region26: #{tpu_custom_call.1} parent=1 // pred_check
      _
    $region27: #{tpu_custom_call.1} parent=1 // pred_check_branch
      %79 = sbr.rel (0) target = $region29
    $region28: #{tpu_custom_call.1} parent=1 // pred_region
      %81 = vsyncadd [#allocation10], 0
      %s82 = sshll.u32 %s6, 4
      %s83 = int_to_ptr.hbm [resolvable:$true] %s82
      %s84 = sshll.u32 [#allocation11], 4
      %s85 = int_to_ptr.vmem [resolvable:$true] %s84
      %90 = dma.hbm_to_vmem [thread:$0]  %s83, 1024, %s85, [#allocation10], 64, 64, 4
    $region29: #{tpu_custom_call.1} parent=1 // pred_fallthru
      _
    // Predicated region
    $region30: #{tpu_custom_call.1} parent=1 // pred_check
      _
    $region31: #{tpu_custom_call.1} parent=1 // pred_check_branch
      %92 = sbr.rel (0) target = $region33
    $region32: #{tpu_custom_call.1} parent=1 // pred_region
      %94 = vsyncadd [#allocation13], 0
      %s95 = sshll.u32 %s7, 4
      %s96 = int_to_ptr.hbm [resolvable:$true] %s95
      %s97 = sshll.u32 [#allocation12], 4
      %s98 = int_to_ptr.vmem [resolvable:$true] %s97
      %103 = dma.hbm_to_vmem [thread:$0]  %s96, 4096, %s98, [#allocation13], 256, 256, 16
    $region33: #{tpu_custom_call.1} parent=1 // pred_fallthru
      _
    // Predicated region
    $region34: #{tpu_custom_call.1} parent=1 // pred_check
      _
    $region35: #{tpu_custom_call.1} parent=1 // pred_check_branch
      %105 = sbr.rel (0) target = $region37
    $region36: #{tpu_custom_call.1} parent=1 // pred_region
      %107 = vsyncadd [#allocation13], 0
      %s108 = sshll.u32 %s8, 4
      %s109 = int_to_ptr.hbm [resolvable:$true] %s108
      %s110 = sshll.u32 [#allocation14], 4
      %s111 = int_to_ptr.vmem [resolvable:$true] %s110
      %116 = dma.hbm_to_vmem [thread:$0]  %s109, 2048, %s111, [#allocation13], 64, 64, 4
    $region37: #{tpu_custom_call.1} parent=1 // pred_fallthru
      _
    // Predicated region
    $region38: #{tpu_custom_call.1} parent=1 // pred_check
      _
    $region39: #{tpu_custom_call.1} parent=1 // pred_check_branch
      %118 = sbr.rel (0) target = $region41
    $region40: #{tpu_custom_call.1} parent=1 // pred_region
      %120 = dma.done [#allocation4], 256
    $region41: #{tpu_custom_call.1} parent=1 // pred_fallthru
      _
    // Predicated region
    $region42: #{tpu_custom_call.1} parent=1 // pred_check
      _
    $region43: #{tpu_custom_call.1} parent=1 // pred_check_branch
      %122 = sbr.rel (0) target = $region45
    $region44: #{tpu_custom_call.1} parent=1 // pred_region
      %124 = dma.done [#allocation7], 512
    $region45: #{tpu_custom_call.1} parent=1 // pred_fallthru
      _
    // Predicated region
    $region46: #{tpu_custom_call.1} parent=1 // pred_check
      _
    $region47: #{tpu_custom_call.1} parent=1 // pred_check_branch
      %126 = sbr.rel (0) target = $region49
    $region48: #{tpu_custom_call.1} parent=1 // pred_region
      %128 = dma.done [#allocation7], 512
    $region49: #{tpu_custom_call.1} parent=1 // pred_fallthru
      _
    // Predicated region
    $region50: #{tpu_custom_call.1} parent=1 // pred_check
      _
    $region51: #{tpu_custom_call.1} parent=1 // pred_check_branch
      %130 = sbr.rel (0) target = $region53
    $region52: #{tpu_custom_call.1} parent=1 // pred_region
      %132 = dma.done [#allocation10], 4096
    $region53: #{tpu_custom_call.1} parent=1 // pred_fallthru
      _
    // Predicated region
    $region54: #{tpu_custom_call.1} parent=1 // pred_check
      _
    $region55: #{tpu_custom_call.1} parent=1 // pred_check_branch
      %134 = sbr.rel (0) target = $region57
    $region56: #{tpu_custom_call.1} parent=1 // pred_region
      %136 = dma.done [#allocation10], 1024
    $region57: #{tpu_custom_call.1} parent=1 // pred_fallthru
      _
    // Predicated region
    $region58: #{tpu_custom_call.1} parent=1 // pred_check
      _
    $region59: #{tpu_custom_call.1} parent=1 // pred_check_branch
      %138 = sbr.rel (0) target = $region61
    $region60: #{tpu_custom_call.1} parent=1 // pred_region
      %140 = dma.done [#allocation13], 4096
    $region61: #{tpu_custom_call.1} parent=1 // pred_fallthru
      _
    // Predicated region
    $region62: #{tpu_custom_call.1} parent=1 // pred_check
      _
    $region63: #{tpu_custom_call.1} parent=1 // pred_check_branch
      %142 = sbr.rel (0) target = $region65
    $region64: #{tpu_custom_call.1} parent=1 // pred_region
      %144 = dma.done [#allocation13], 2048
    $region65: #{tpu_custom_call.1} parent=1 // pred_fallthru
      _
    %v146 = vld [vmem:[#allocation3] sm:$0xff]
    %v147 = vld [vmem:[#allocation3 + $0x8] sm:$0xff]
    %v148 = vld [vmem:[%s3] sm:$0x1]
    %v149 = vmul.f32 %v146, %v146
    %v150 = vmul.f32 %v147, %v147
    %151 = vadd.xlane.f32.xlu0 %v149
    %v152 = vpop.xlane.xlu0 %151
    %153 = vadd.xlane.f32.xlu0 %v150
    %v154 = vpop.xlane.xlu0 %153
    %v155 = vrcp.pop 128.0
    %v156 = vmul.f32 128.0, %v155
    %v157 = vsub.f32 1.0, %v156
    %v158 = vmul.f32 %v155, %v157
    %v159 = vadd.f32 %v155, %v158
    %vm160 = vweird.f32 %v155
    %v161 = vsel %vm160, %v155, %v159
    %v162 = vmul.f32 %v152, %v161
    %v163 = vmul.f32 %v154, %v161
    %v164 = vadd.f32 %v162, 1e-06
    %v165 = vadd.f32 %v163, 1e-06
    %v166 = vrsqrt.pop %v164
    %v167 = vmul.f32 %v166, %v164
    %v168 = vmul.f32 %v167, %v166
    %v169 = vmul.f32 0.5, %v168
    %v170 = vsub.f32 1.5, %v169
    %v171 = vmul.f32 %v166, %v170
    %vm172 = vweird.f32 %v164
    %vm173 = vweird.f32 %v166
    %vm174 = vmor %vm172, %vm173
    %v175 = vsel %vm174, %v166, %v171
    %v176 = vrsqrt.pop %v165
    %v177 = vmul.f32 %v176, %v165
    %v178 = vmul.f32 %v177, %v176
    %v179 = vmul.f32 0.5, %v178
    %v180 = vsub.f32 1.5, %v179
    %v181 = vmul.f32 %v176, %v180
    %vm182 = vweird.f32 %v165
    %vm183 = vweird.f32 %v176
    %vm184 = vmor %vm182, %vm183
    %v185 = vsel %vm184, %v176, %v181
    %v186 = vmul.f32 %v146, %v175
    %v187 = vmul.f32 %v147, %v185
    %v189 = vperm.slane %v148, 0
    %v191 = vmul.f32 %v186, %v189
    %v192 = vmul.f32 %v187, %v189
    %v193 = vpack.c.bf16 %v192, %v191
    %v194 = vld [vmem:[#allocation9] sm:$0xff]
    %v195 = vld [vmem:[#allocation9 + $0x8] sm:$0xff]
    %v196 = vld [vmem:[#allocation9 + $0x10] sm:$0xff]
    %v197 = vld [vmem:[#allocation9 + $0x18] sm:$0xff]
    %v198 = vld [vmem:[#allocation9 + $0x20] sm:$0xff]
    %v199 = vld [vmem:[#allocation9 + $0x28] sm:$0xff]
    %v200 = vld [vmem:[#allocation9 + $0x30] sm:$0xff]
    %v201 = vld [vmem:[#allocation9 + $0x38] sm:$0xff]
    %v202 = vld [vmem:[#allocation9 + $0x40] sm:$0xff]
    %v203 = vld [vmem:[#allocation9 + $0x48] sm:$0xff]
    %v204 = vld [vmem:[#allocation9 + $0x50] sm:$0xff]
    %v205 = vld [vmem:[#allocation9 + $0x58] sm:$0xff]
    %v206 = vld [vmem:[#allocation9 + $0x60] sm:$0xff]
    %v207 = vld [vmem:[#allocation9 + $0x68] sm:$0xff]
    %v208 = vld [vmem:[#allocation9 + $0x70] sm:$0xff]
    %v209 = vld [vmem:[#allocation9 + $0x78] sm:$0xff]
    %v210 = vld [vmem:[#allocation9 + $0x80] sm:$0xff]
    %v211 = vld [vmem:[#allocation9 + $0x88] sm:$0xff]
    %v212 = vld [vmem:[#allocation9 + $0x90] sm:$0xff]
    %v213 = vld [vmem:[#allocation9 + $0x98] sm:$0xff]
    %v214 = vld [vmem:[#allocation9 + $0xa0] sm:$0xff]
    %v215 = vld [vmem:[#allocation9 + $0xa8] sm:$0xff]
    %v216 = vld [vmem:[#allocation9 + $0xb0] sm:$0xff]
    %v217 = vld [vmem:[#allocation9 + $0xb8] sm:$0xff]
    %v218 = vld [vmem:[#allocation9 + $0xc0] sm:$0xff]
    %v219 = vld [vmem:[#allocation9 + $0xc8] sm:$0xff]
    %v220 = vld [vmem:[#allocation9 + $0xd0] sm:$0xff]
    %v221 = vld [vmem:[#allocation9 + $0xd8] sm:$0xff]
    %v222 = vld [vmem:[#allocation9 + $0xe0] sm:$0xff]
    %v223 = vld [vmem:[#allocation9 + $0xe8] sm:$0xff]
    %v224 = vld [vmem:[#allocation9 + $0xf0] sm:$0xff]
    %v225 = vld [vmem:[#allocation9 + $0xf8] sm:$0xff]
    %v258 = vunpack.c.l.b16 %v194
    %v259 = vunpack.c.h.b16 %v194
    %v260 = vunpack.c.l.b16 %v195
    %v261 = vunpack.c.h.b16 %v195
    %v262 = vunpack.c.l.b16 %v196
    %v263 = vunpack.c.h.b16 %v196
    %v264 = vunpack.c.l.b16 %v197
    %v265 = vunpack.c.h.b16 %v197
    %v266 = vunpack.c.l.b16 %v198
    %v267 = vunpack.c.h.b16 %v198
    %v268 = vunpack.c.l.b16 %v199
    %v269 = vunpack.c.h.b16 %v199
    %v270 = vunpack.c.l.b16 %v200
    %v271 = vunpack.c.h.b16 %v200
    %v272 = vunpack.c.l.b16 %v201
    %v273 = vunpack.c.h.b16 %v201
    %v274 = vunpack.c.l.b16 %v202
    %v275 = vunpack.c.h.b16 %v202
    %v276 = vunpack.c.l.b16 %v203
    %v277 = vunpack.c.h.b16 %v203
    %v278 = vunpack.c.l.b16 %v204
    %v279 = vunpack.c.h.b16 %v204
    %v280 = vunpack.c.l.b16 %v205
    %v281 = vunpack.c.h.b16 %v205
    %v282 = vunpack.c.l.b16 %v206
    %v283 = vunpack.c.h.b16 %v206
    %v284 = vunpack.c.l.b16 %v207
    %v285 = vunpack.c.h.b16 %v207
    %v286 = vunpack.c.l.b16 %v208
    %v287 = vunpack.c.h.b16 %v208
    %v288 = vunpack.c.l.b16 %v209
    %v289 = vunpack.c.h.b16 %v209
    %v290 = vunpack.c.l.b16 %v210
    %v291 = vunpack.c.h.b16 %v210
    %v292 = vunpack.c.l.b16 %v211
    %v293 = vunpack.c.h.b16 %v211
    %v294 = vunpack.c.l.b16 %v212
    %v295 = vunpack.c.h.b16 %v212
    %v296 = vunpack.c.l.b16 %v213
    %v297 = vunpack.c.h.b16 %v213
    %v298 = vunpack.c.l.b16 %v214
    %v299 = vunpack.c.h.b16 %v214
    %v300 = vunpack.c.l.b16 %v215
    %v301 = vunpack.c.h.b16 %v215
    %v302 = vunpack.c.l.b16 %v216
    %v303 = vunpack.c.h.b16 %v216
    %v304 = vunpack.c.l.b16 %v217
    %v305 = vunpack.c.h.b16 %v217
    %v306 = vunpack.c.l.b16 %v218
    %v307 = vunpack.c.h.b16 %v218
    %v308 = vunpack.c.l.b16 %v219
    %v309 = vunpack.c.h.b16 %v219
    %v310 = vunpack.c.l.b16 %v220
    %v311 = vunpack.c.h.b16 %v220
    %v312 = vunpack.c.l.b16 %v221
    %v313 = vunpack.c.h.b16 %v221
    %v314 = vunpack.c.l.b16 %v222
    %v315 = vunpack.c.h.b16 %v222
    %v316 = vunpack.c.l.b16 %v223
    %v317 = vunpack.c.h.b16 %v223
    %v318 = vunpack.c.l.b16 %v224
    %v319 = vunpack.c.h.b16 %v224
    %v320 = vunpack.c.l.b16 %v225
    %v321 = vunpack.c.h.b16 %v225
    %v322 = vpack.c.b16 %v262, %v258
    %v323 = vpack.c.b16 %v263, %v259
    %v324 = vpack.c.b16 %v264, %v260
    %v325 = vpack.c.b16 %v265, %v261
    %v326 = vpack.c.b16 %v270, %v266
    %v327 = vpack.c.b16 %v271, %v267
    %v328 = vpack.c.b16 %v272, %v268
    %v329 = vpack.c.b16 %v273, %v269
    %v330 = vpack.c.b16 %v278, %v274
    %v331 = vpack.c.b16 %v279, %v275
    %v332 = vpack.c.b16 %v280, %v276
    %v333 = vpack.c.b16 %v281, %v277
    %v334 = vpack.c.b16 %v286, %v282
    %v335 = vpack.c.b16 %v287, %v283
    %v336 = vpack.c.b16 %v288, %v284
    %v337 = vpack.c.b16 %v289, %v285
    %v338 = vpack.c.b16 %v294, %v290
    %v339 = vpack.c.b16 %v295, %v291
    %v340 = vpack.c.b16 %v296, %v292
    %v341 = vpack.c.b16 %v297, %v293
    %v342 = vpack.c.b16 %v302, %v298
    %v343 = vpack.c.b16 %v303, %v299
    %v344 = vpack.c.b16 %v304, %v300
    %v345 = vpack.c.b16 %v305, %v301
    %v346 = vpack.c.b16 %v310, %v306
    %v347 = vpack.c.b16 %v311, %v307
    %v348 = vpack.c.b16 %v312, %v308
    %v349 = vpack.c.b16 %v313, %v309
    %v350 = vpack.c.b16 %v318, %v314
    %v351 = vpack.c.b16 %v319, %v315
    %v352 = vpack.c.b16 %v320, %v316
    %v353 = vpack.c.b16 %v321, %v317
    %386 = vmatpush.bf16.msra.mxu0 %v350
    %387 = vmatpush.bf16.msra.mxu0 %v346
    %388 = vmatpush.bf16.msra.mxu0 %v342
    %389 = vmatpush.bf16.msra.mxu0 %v338
    %390 = vmatpush.bf16.msra.mxu0 %v334
    %391 = vmatpush.bf16.msra.mxu0 %v330
    %392 = vmatpush.bf16.msra.mxu0 %v326
    %393 = vmatpush.bf16.msra.mxu0 %v322
    %394 = vmatmul.bf16.gmra.mxu0 %v193
    %v395 = vpop.f32.mrf.mxu0
    %v396 = vadd.f32 0.0, %v395
    %v397 = vpop.f32.mrf.mxu0
    %v398 = vadd.f32 0.0, %v397
    %399 = vdwg.mxu0
    %400 = vmatpush.bf16.msra.mxu0 %v351
    %401 = vmatpush.bf16.msra.mxu0 %v347
    %402 = vmatpush.bf16.msra.mxu0 %v343
    %403 = vmatpush.bf16.msra.mxu0 %v339
    %404 = vmatpush.bf16.msra.mxu0 %v335
    %405 = vmatpush.bf16.msra.mxu0 %v331
    %406 = vmatpush.bf16.msra.mxu0 %v327
    %407 = vmatpush.bf16.msra.mxu0 %v323
    %408 = vmatmul.bf16.gmra.mxu0 %v193
    %v409 = vpop.f32.mrf.mxu0
    %v410 = vadd.f32 0.0, %v409
    %v411 = vpop.f32.mrf.mxu0
    %v412 = vadd.f32 0.0, %v411
    %413 = vdwg.mxu0
    %414 = vmatpush.bf16.msra.mxu0 %v352
    %415 = vmatpush.bf16.msra.mxu0 %v348
    %416 = vmatpush.bf16.msra.mxu0 %v344
    %417 = vmatpush.bf16.msra.mxu0 %v340
    %418 = vmatpush.bf16.msra.mxu0 %v336
    %419 = vmatpush.bf16.msra.mxu0 %v332
    %420 = vmatpush.bf16.msra.mxu0 %v328
    %421 = vmatpush.bf16.msra.mxu0 %v324
    %422 = vmatmul.bf16.gmra.mxu0 %v193
    %v423 = vpop.f32.mrf.mxu0
    %v424 = vadd.f32 0.0, %v423
    %v425 = vpop.f32.mrf.mxu0
    %v426 = vadd.f32 0.0, %v425
    %427 = vdwg.mxu0
    %428 = vmatpush.bf16.msra.mxu0 %v353
    %429 = vmatpush.bf16.msra.mxu0 %v349
    %430 = vmatpush.bf16.msra.mxu0 %v345
    %431 = vmatpush.bf16.msra.mxu0 %v341
    %432 = vmatpush.bf16.msra.mxu0 %v337
    %433 = vmatpush.bf16.msra.mxu0 %v333
    %434 = vmatpush.bf16.msra.mxu0 %v329
    %435 = vmatpush.bf16.msra.mxu0 %v325
    %436 = vmatmul.bf16.gmra.mxu0 %v193
    %v437 = vpop.f32.mrf.mxu0
    %v438 = vadd.f32 0.0, %v437
    %v439 = vpop.f32.mrf.mxu0
    %v440 = vadd.f32 0.0, %v439
    %441 = vdwg.mxu0
    %v442 = vld [vmem:[#allocation6] sm:$0xff]
    %v443 = vld [vmem:[#allocation6 + $0x8] sm:$0xff]
    %v444 = vld [vmem:[#allocation6 + $0x10] sm:$0xff]
    %v445 = vld [vmem:[#allocation6 + $0x18] sm:$0xff]
    %v446 = vmul.f32 %v396, %v442
    %v447 = vmul.f32 %v410, %v443
    %v448 = vmul.f32 %v398, %v444
    %v449 = vmul.f32 %v412, %v445
    %v450 = vld [vmem:[#allocation8] sm:$0xff]
    %v451 = vld [vmem:[#allocation8 + $0x8] sm:$0xff]
    %v452 = vld [vmem:[#allocation8 + $0x10] sm:$0xff]
    %v453 = vld [vmem:[#allocation8 + $0x18] sm:$0xff]
    %v454 = vmul.f32 %v424, %v450
    %v455 = vmul.f32 %v438, %v451
    %v456 = vmul.f32 %v426, %v452
    %v457 = vmul.f32 %v440, %v453
    %v458 = vadd.f32 %v446, %v454
    %v459 = vadd.f32 %v447, %v455
    %v460 = vadd.f32 %v448, %v456
    %v461 = vadd.f32 %v449, %v457
    %v462 = vlaneseq
    %v463 = vshrl.u32 %v462, 7
    %v464 = vadd.s32 %v463, 8
    %v465 = vadd.s32 %v463, 16
    %v466 = vadd.s32 %v463, 24
    %v467 = vlaneseq
    %v468 = vand.u32 %v467, 127
    %vm469 = vcmp.lt.s32.totalorder %v463, 0
    %v470 = vsub.s32 0, %v463
    %v471 = vsel %vm469, %v470, %v463
    %v472 = vshrl.u32 %v471, 4
    %v473 = vand.u32 %v471, 15
    %v474 = vsub.s32 0, %v473
    %v475 = vsel %vm469, %v474, %v473
    %vm476 = vcmp.lt.s32.totalorder %v464, 0
    %v477 = vsub.s32 0, %v464
    %v478 = vsel %vm476, %v477, %v464
    %v479 = vshrl.u32 %v478, 4
    %v480 = vand.u32 %v478, 15
    %v481 = vsub.s32 0, %v480
    %v482 = vsel %vm476, %v481, %v480
    %vm483 = vcmp.lt.s32.totalorder %v465, 0
    %v484 = vsub.s32 0, %v465
    %v485 = vsel %vm483, %v484, %v465
    %v486 = vshrl.u32 %v485, 4
    %v487 = vand.u32 %v485, 15
    %v488 = vsub.s32 0, %v487
    %v489 = vsel %vm483, %v488, %v487
    %vm490 = vcmp.lt.s32.totalorder %v466, 0
    %v491 = vsub.s32 0, %v466
    %v492 = vsel %vm490, %v491, %v466
    %v493 = vshrl.u32 %v492, 4
    %v494 = vand.u32 %v492, 15
    %v495 = vsub.s32 0, %v494
    %v496 = vsel %vm490, %v495, %v494
    %vm497 = vcmp.le.s32.totalorder %v468, %v475
    %vm498 = vcmp.le.s32.totalorder %v468, %v482
    %vm499 = vcmp.le.s32.totalorder %v468, %v489
    %vm500 = vcmp.le.s32.totalorder %v468, %v496
    %v501 = vsub.s32 %v475, %v468
    %v502 = vsub.s32 %v482, %v468
    %v503 = vsub.s32 %v489, %v468
    %v504 = vsub.s32 %v496, %v468
    %vm505 = vcmp.lt.s32.totalorder %v501, 4096
    %vm506 = vcmp.lt.s32.totalorder %v502, 4096
    %vm507 = vcmp.lt.s32.totalorder %v503, 4096
    %vm508 = vcmp.lt.s32.totalorder %v504, 4096
    %vm509 = vmand %vm497, %vm505
    %vm510 = vmand %vm498, %vm506
    %vm511 = vmand %vm499, %vm507
    %vm512 = vmand %vm500, %vm508
    %v513 = vpack.c.bf16 %v461, %v459
    %516 = vrot.lane.b32.xlu0 %v458, 96
    %v517 = vpop.permute.xlu0 %516
    %518 = vrot.lane.b32.xlu0 %v460, 96
    %v519 = vpop.permute.xlu0 %518
    %v522 = vpack.c.bf16 %v460, %v458
    %v523 = vpack.c.bf16 %v519, %v517
    %vm524 = vcmask 261120
    %v526 = vsel %vm524, %v522, 0
    %v529 = vsel %vm524, %v523, 0
    %v532 = vsel %vm524, %v513, 0
    %534 = vmatpush.bf16.xpose.msra.mxu0 0
    %535 = vmatpush.bf16.xpose.msra.mxu0 0
    %536 = vmatpush.bf16.xpose.msra.mxu0 0
    %537 = vmatpush.bf16.xpose.msra.mxu0 0
    %538 = vmatpush.bf16.xpose.msra.mxu0 0
    %539 = vmatpush.bf16.xpose.msra.mxu0 0
    %540 = vmatpush.bf16.xpose.msra.mxu0 0
    %541 = vmatpush.bf16.xpose.msra.mxu0 %v532
    %542 = vmatmul.bf16.gmra.mxu0 %v526
    %v543 = vpop.f32.mrf.mxu0
    %v544 = vadd.f32 0.0, %v543
    %v545 = vpop.f32.mrf.mxu0
    %v546 = vadd.f32 0.0, %v545
    %547 = vmatmul.bf16.gmra.mxu0 %v529
    %v548 = vpop.f32.mrf.mxu0
    %v549 = vadd.f32 0.0, %v548
    %v550 = vpop.f32.mrf.mxu0
    %v551 = vadd.f32 0.0, %v550
    %552 = vdwg.mxu0
    %v553 = vsel %vm509, %v544, -2.3819763e+38
    %v554 = vsel %vm510, %v546, -2.3819763e+38
    %v555 = vsel %vm511, %v549, -2.3819763e+38
    %v556 = vsel %vm512, %v551, -2.3819763e+38
    %vm557 = vcmask 130048
    %v558 = vsel %vm557, %v553, -inf
    %559 = vmax.xlane.f32.xlu0 %v558
    %v560 = vpop.xlane.xlu0 %559
    %v561 = vsel %vm557, %v554, -inf
    %562 = vmax.xlane.f32.xlu0 %v561
    %v563 = vpop.xlane.xlu0 %562
    %v564 = vsel %vm557, %v555, -inf
    %565 = vmax.xlane.f32.xlu0 %v564
    %v566 = vpop.xlane.xlu0 %565
    %v567 = vsel %vm557, %v556, -inf
    %568 = vmax.xlane.f32.xlu0 %v567
    %v569 = vpop.xlane.xlu0 %568
    %v570 = vsub.f32 %v553, %v560
    %v571 = vsub.f32 %v554, %v563
    %v572 = vsub.f32 %v555, %v566
    %v573 = vsub.f32 %v556, %v569
    %v574 = vmul.f32 %v570, 1.442695
    %v575 = vpow.pop %v574
    %v576 = vmul.f32 %v571, 1.442695
    %v577 = vpow.pop %v576
    %v578 = vmul.f32 %v572, 1.442695
    %v579 = vpow.pop %v578
    %v580 = vmul.f32 %v573, 1.442695
    %v581 = vpow.pop %v580
    %v582 = vsel %vm557, %v575, 0.0
    %583 = vadd.xlane.f32.xlu0 %v582
    %v584 = vpop.xlane.xlu0 %583
    %v585 = vsel %vm557, %v577, 0.0
    %586 = vadd.xlane.f32.xlu0 %v585
    %v587 = vpop.xlane.xlu0 %586
    %v588 = vsel %vm557, %v579, 0.0
    %589 = vadd.xlane.f32.xlu0 %v588
    %v590 = vpop.xlane.xlu0 %589
    %v591 = vsel %vm557, %v581, 0.0
    %592 = vadd.xlane.f32.xlu0 %v591
    %v593 = vpop.xlane.xlu0 %592
    %v594 = vrcp.pop %v584
    %v595 = vrcp.pop %v587
    %v596 = vrcp.pop %v590
    %v597 = vrcp.pop %v593
    %v598 = vmul.f32 %v575, %v594
    %v599 = vmul.f32 %v577, %v595
    %v600 = vmul.f32 %v579, %v596
    %v601 = vmul.f32 %v581, %v597
    %v602 = vpack.c.bf16 %v599, %v598
    %v603 = vpack.c.bf16 %v601, %v600
    %605 = vrot.lane.b32.xlu0 %v513, 64
    %v606 = vpop.permute.xlu0 %605
    %v609 = vsel %vm557, %v602, 0
    %v612 = vsel %vm557, %v603, 0
    %614 = vmatpush.bf16.msra.mxu0 0
    %615 = vmatpush.bf16.msra.mxu0 0
    %616 = vmatpush.bf16.msra.mxu0 0
    %617 = vmatpush.bf16.msra.mxu0 0
    %618 = vmatpush.bf16.msra.mxu0 0
    %619 = vmatpush.bf16.msra.mxu0 0
    %620 = vmatpush.bf16.msra.mxu0 0
    %621 = vmatpush.bf16.msra.mxu0 %v606
    %622 = vmatmul.bf16.gmra.mxu0 %v609
    %v623 = vpop.f32.mrf.mxu0
    %v624 = vadd.f32 0.0, %v623
    %v625 = vpop.f32.mrf.mxu0
    %v626 = vadd.f32 0.0, %v625
    %627 = vmatmul.bf16.gmra.mxu0 %v612
    %v628 = vpop.f32.mrf.mxu0
    %v629 = vadd.f32 0.0, %v628
    %v630 = vpop.f32.mrf.mxu0
    %v631 = vadd.f32 0.0, %v630
    %632 = vdwg.mxu0
    %633 = vst.msk [vmem:[#allocation2] sm:$0xff] %vm524, %v624
    %634 = vst.msk [vmem:[#allocation2 + $0x8] sm:$0xff] %vm524, %v626
    %637 = vrot.lane.b32.xlu0 %v629, 32
    %v638 = vpop.permute.xlu0 %637
    %639 = vrot.lane.b32.xlu0 %v631, 32
    %v640 = vpop.permute.xlu0 %639
    %vm643 = vcmask 523520
    %644 = vst.msk [vmem:[#allocation2] sm:$0xff] %vm643, %v638
    %645 = vst.msk [vmem:[#allocation2 + $0x8] sm:$0xff] %vm643, %v640
    %648 = vrot.lane.b32.xlu0 %v522, 64
    %v649 = vpop.permute.xlu0 %648
    %650 = vrot.lane.b32.xlu0 %v523, 64
    %v651 = vpop.permute.xlu0 %650
    %652 = vrot.lane.b32.xlu0 %v513, 96
    %v653 = vpop.permute.xlu0 %652
    %v655 = vsel %vm524, %v649, 0
    %v658 = vsel %vm524, %v651, 0
    %v661 = vsel %vm524, %v653, 0
    %663 = vmatpush.bf16.xpose.msra.mxu0 0
    %664 = vmatpush.bf16.xpose.msra.mxu0 0
    %665 = vmatpush.bf16.xpose.msra.mxu0 0
    %666 = vmatpush.bf16.xpose.msra.mxu0 0
    %667 = vmatpush.bf16.xpose.msra.mxu0 0
    %668 = vmatpush.bf16.xpose.msra.mxu0 0
    %669 = vmatpush.bf16.xpose.msra.mxu0 0
    %670 = vmatpush.bf16.xpose.msra.mxu0 %v661
    %671 = vmatmul.bf16.gmra.mxu0 %v655
    %v672 = vpop.f32.mrf.mxu0
    %v673 = vadd.f32 0.0, %v672
    %v674 = vpop.f32.mrf.mxu0
    %v675 = vadd.f32 0.0, %v674
    %676 = vmatmul.bf16.gmra.mxu0 %v658
    %v677 = vpop.f32.mrf.mxu0
    %v678 = vadd.f32 0.0, %v677
    %v679 = vpop.f32.mrf.mxu0
    %v680 = vadd.f32 0.0, %v679
    %681 = vdwg.mxu0
    %v682 = vsel %vm509, %v673, -2.3819763e+38
    %v683 = vsel %vm510, %v675, -2.3819763e+38
    %v684 = vsel %vm511, %v678, -2.3819763e+38
    %v685 = vsel %vm512, %v680, -2.3819763e+38
    %v686 = vsel %vm557, %v682, -inf
    %687 = vmax.xlane.f32.xlu0 %v686
    %v688 = vpop.xlane.xlu0 %687
    %v689 = vsel %vm557, %v683, -inf
    %690 = vmax.xlane.f32.xlu0 %v689
    %v691 = vpop.xlane.xlu0 %690
    %v692 = vsel %vm557, %v684, -inf
    %693 = vmax.xlane.f32.xlu0 %v692
    %v694 = vpop.xlane.xlu0 %693
    %v695 = vsel %vm557, %v685, -inf
    %696 = vmax.xlane.f32.xlu0 %v695
    %v697 = vpop.xlane.xlu0 %696
    %v698 = vsub.f32 %v682, %v688
    %v699 = vsub.f32 %v683, %v691
    %v700 = vsub.f32 %v684, %v694
    %v701 = vsub.f32 %v685, %v697
    %v702 = vmul.f32 %v698, 1.442695
    %v703 = vpow.pop %v702
    %v704 = vmul.f32 %v699, 1.442695
    %v705 = vpow.pop %v704
    %v706 = vmul.f32 %v700, 1.442695
    %v707 = vpow.pop %v706
    %v708 = vmul.f32 %v701, 1.442695
    %v709 = vpow.pop %v708
    %v710 = vsel %vm557, %v703, 0.0
    %711 = vadd.xlane.f32.xlu0 %v710
    %v712 = vpop.xlane.xlu0 %711
    %v713 = vsel %vm557, %v705, 0.0
    %714 = vadd.xlane.f32.xlu0 %v713
    %v715 = vpop.xlane.xlu0 %714
    %v716 = vsel %vm557, %v707, 0.0
    %717 = vadd.xlane.f32.xlu0 %v716
    %v718 = vpop.xlane.xlu0 %717
    %v719 = vsel %vm557, %v709, 0.0
    %720 = vadd.xlane.f32.xlu0 %v719
    %v721 = vpop.xlane.xlu0 %720
    %v722 = vrcp.pop %v712
    %v723 = vrcp.pop %v715
    %v724 = vrcp.pop %v718
    %v725 = vrcp.pop %v721
    %v726 = vmul.f32 %v703, %v722
    %v727 = vmul.f32 %v705, %v723
    %v728 = vmul.f32 %v707, %v724
    %v729 = vmul.f32 %v709, %v725
    %v730 = vpack.c.bf16 %v727, %v726
    %v731 = vpack.c.bf16 %v729, %v728
    %732 = vrot.lane.b32.xlu0 %v513, 32
    %v733 = vpop.permute.xlu0 %732
    %v736 = vsel %vm557, %v730, 0
    %v739 = vsel %vm557, %v731, 0
    %741 = vmatpush.bf16.msra.mxu0 0
    %742 = vmatpush.bf16.msra.mxu0 0
    %743 = vmatpush.bf16.msra.mxu0 0
    %744 = vmatpush.bf16.msra.mxu0 0
    %745 = vmatpush.bf16.msra.mxu0 0
    %746 = vmatpush.bf16.msra.mxu0 0
    %747 = vmatpush.bf16.msra.mxu0 0
    %748 = vmatpush.bf16.msra.mxu0 %v733
    %749 = vmatmul.bf16.gmra.mxu0 %v736
    %v750 = vpop.f32.mrf.mxu0
    %v751 = vadd.f32 0.0, %v750
    %v752 = vpop.f32.mrf.mxu0
    %v753 = vadd.f32 0.0, %v752
    %754 = vmatmul.bf16.gmra.mxu0 %v739
    %v755 = vpop.f32.mrf.mxu0
    %v756 = vadd.f32 0.0, %v755
    %v757 = vpop.f32.mrf.mxu0
    %v758 = vadd.f32 0.0, %v757
    %759 = vdwg.mxu0
    %762 = vrot.lane.b32.xlu0 %v751, 64
    %v763 = vpop.permute.xlu0 %762
    %764 = vrot.lane.b32.xlu0 %v753, 64
    %v765 = vpop.permute.xlu0 %764
    %vm768 = vcmask 785920
    %769 = vst.msk [vmem:[#allocation2] sm:$0xff] %vm768, %v763
    %770 = vst.msk [vmem:[#allocation2 + $0x8] sm:$0xff] %vm768, %v765
    %773 = vrot.lane.b32.xlu0 %v756, 96
    %v774 = vpop.permute.xlu0 %773
    %775 = vrot.lane.b32.xlu0 %v758, 96
    %v776 = vpop.permute.xlu0 %775
    %vm779 = vcmask 1048320
    %780 = vst.msk [vmem:[#allocation2] sm:$0xff] %vm779, %v774
    %781 = vst.msk [vmem:[#allocation2 + $0x8] sm:$0xff] %vm779, %v776
    %v782 = vld [vmem:[#allocation2] sm:$0xff]
    %v783 = vld [vmem:[#allocation2 + $0x8] sm:$0xff]
    %v784 = vpack.c.bf16 %v783, %v782
    %v785 = vld [vmem:[#allocation11] sm:$0xf]
    %v786 = vld [vmem:[#allocation11 + $0x4] sm:$0xf]
    %v787 = vld [vmem:[#allocation11 + $0x8] sm:$0xf]
    %v788 = vld [vmem:[#allocation11 + $0xc] sm:$0xf]
    %v789 = vld [vmem:[#allocation11 + $0x10] sm:$0xf]
    %v790 = vld [vmem:[#allocation11 + $0x14] sm:$0xf]
    %v791 = vld [vmem:[#allocation11 + $0x18] sm:$0xf]
    %v792 = vld [vmem:[#allocation11 + $0x1c] sm:$0xf]
    %v793 = vld [vmem:[#allocation11 + $0x20] sm:$0xf]
    %v794 = vld [vmem:[#allocation11 + $0x24] sm:$0xf]
    %v795 = vld [vmem:[#allocation11 + $0x28] sm:$0xf]
    %v796 = vld [vmem:[#allocation11 + $0x2c] sm:$0xf]
    %v797 = vld [vmem:[#allocation11 + $0x30] sm:$0xf]
    %v798 = vld [vmem:[#allocation11 + $0x34] sm:$0xf]
    %v799 = vld [vmem:[#allocation11 + $0x38] sm:$0xf]
    %v800 = vld [vmem:[#allocation11 + $0x3c] sm:$0xf]
    %v817 = vunpack.c.l.b16 %v785
    %v818 = vunpack.c.l.b16 %v786
    %v819 = vunpack.c.l.b16 %v787
    %v820 = vunpack.c.l.b16 %v788
    %v821 = vunpack.c.l.b16 %v789
    %v822 = vunpack.c.l.b16 %v790
    %v823 = vunpack.c.l.b16 %v791
    %v824 = vunpack.c.l.b16 %v792
    %v825 = vunpack.c.l.b16 %v793
    %v826 = vunpack.c.l.b16 %v794
    %v827 = vunpack.c.l.b16 %v795
    %v828 = vunpack.c.l.b16 %v796
    %v829 = vunpack.c.l.b16 %v797
    %v830 = vunpack.c.l.b16 %v798
    %v831 = vunpack.c.l.b16 %v799
    %v832 = vunpack.c.l.b16 %v800
    %v833 = vpack.c.b16 %v818, %v817
    %v834 = vpack.c.b16 %v820, %v819
    %v835 = vpack.c.b16 %v822, %v821
    %v836 = vpack.c.b16 %v824, %v823
    %v837 = vpack.c.b16 %v826, %v825
    %v838 = vpack.c.b16 %v828, %v827
    %v839 = vpack.c.b16 %v830, %v829
    %v840 = vpack.c.b16 %v832, %v831
    %849 = vmatpush.bf16.msra.mxu0 %v840
    %850 = vmatpush.bf16.msra.mxu0 %v839
    %851 = vmatpush.bf16.msra.mxu0 %v838
    %852 = vmatpush.bf16.msra.mxu0 %v837
    %853 = vmatpush.bf16.msra.mxu0 %v836
    %854 = vmatpush.bf16.msra.mxu0 %v835
    %855 = vmatpush.bf16.msra.mxu0 %v834
    %856 = vmatpush.bf16.msra.mxu0 %v833
    %857 = vmatmul.bf16.gmra.mxu0 %v784
    %v858 = vpop.f32.mrf.mxu0
    %v859 = vadd.f32 0.0, %v858
    %v860 = vpop.f32.mrf.mxu0
    %v861 = vadd.f32 0.0, %v860
    %862 = vdwg.mxu0
    %v863 = vadd.f32 %v146, %v859
    %v864 = vadd.f32 %v147, %v861
    %865 = vst [vmem:[#allocation16] sm:$0xff] %v863
    %866 = vst [vmem:[#allocation16 + $0x8] sm:$0xff] %v864
    %v867 = vld [vmem:[%s4] sm:$0x1]
    %v868 = vmul.f32 %v863, %v863
    %v869 = vmul.f32 %v864, %v864
    %870 = vadd.xlane.f32.xlu0 %v868
    %v871 = vpop.xlane.xlu0 %870
    %872 = vadd.xlane.f32.xlu0 %v869
    %v873 = vpop.xlane.xlu0 %872
    %v874 = vmul.f32 %v871, %v161
    %v875 = vmul.f32 %v873, %v161
    %v876 = vadd.f32 %v874, 1e-06
    %v877 = vadd.f32 %v875, 1e-06
    %v878 = vrsqrt.pop %v876
    %v879 = vmul.f32 %v878, %v876
    %v880 = vmul.f32 %v879, %v878
    %v881 = vmul.f32 0.5, %v880
    %v882 = vsub.f32 1.5, %v881
    %v883 = vmul.f32 %v878, %v882
    %vm884 = vweird.f32 %v876
    %vm885 = vweird.f32 %v878
    %vm886 = vmor %vm884, %vm885
    %v887 = vsel %vm886, %v878, %v883
    %v888 = vrsqrt.pop %v877
    %v889 = vmul.f32 %v888, %v877
    %v890 = vmul.f32 %v889, %v888
    %v891 = vmul.f32 0.5, %v890
    %v892 = vsub.f32 1.5, %v891
    %v893 = vmul.f32 %v888, %v892
    %vm894 = vweird.f32 %v877
    %vm895 = vweird.f32 %v888
    %vm896 = vmor %vm894, %vm895
    %v897 = vsel %vm896, %v888, %v893
    %v898 = vmul.f32 %v863, %v887
    %v899 = vmul.f32 %v864, %v897
    %v901 = vperm.slane %v867, 0
    %v903 = vmul.f32 %v898, %v901
    %v904 = vmul.f32 %v899, %v901
    %v905 = vpack.c.bf16 %v904, %v903
    %v906 = vld [vmem:[#allocation12] sm:$0xff]
    %v907 = vld [vmem:[#allocation12 + $0x8] sm:$0xff]
    %v908 = vld [vmem:[#allocation12 + $0x10] sm:$0xff]
    %v909 = vld [vmem:[#allocation12 + $0x18] sm:$0xff]
    %v910 = vld [vmem:[#allocation12 + $0x20] sm:$0xff]
    %v911 = vld [vmem:[#allocation12 + $0x28] sm:$0xff]
    %v912 = vld [vmem:[#allocation12 + $0x30] sm:$0xff]
    %v913 = vld [vmem:[#allocation12 + $0x38] sm:$0xff]
    %v914 = vld [vmem:[#allocation12 + $0x40] sm:$0xff]
    %v915 = vld [vmem:[#allocation12 + $0x48] sm:$0xff]
    %v916 = vld [vmem:[#allocation12 + $0x50] sm:$0xff]
    %v917 = vld [vmem:[#allocation12 + $0x58] sm:$0xff]
    %v918 = vld [vmem:[#allocation12 + $0x60] sm:$0xff]
    %v919 = vld [vmem:[#allocation12 + $0x68] sm:$0xff]
    %v920 = vld [vmem:[#allocation12 + $0x70] sm:$0xff]
    %v921 = vld [vmem:[#allocation12 + $0x78] sm:$0xff]
    %v922 = vld [vmem:[#allocation12 + $0x80] sm:$0xff]
    %v923 = vld [vmem:[#allocation12 + $0x88] sm:$0xff]
    %v924 = vld [vmem:[#allocation12 + $0x90] sm:$0xff]
    %v925 = vld [vmem:[#allocation12 + $0x98] sm:$0xff]
    %v926 = vld [vmem:[#allocation12 + $0xa0] sm:$0xff]
    %v927 = vld [vmem:[#allocation12 + $0xa8] sm:$0xff]
    %v928 = vld [vmem:[#allocation12 + $0xb0] sm:$0xff]
    %v929 = vld [vmem:[#allocation12 + $0xb8] sm:$0xff]
    %v930 = vld [vmem:[#allocation12 + $0xc0] sm:$0xff]
    %v931 = vld [vmem:[#allocation12 + $0xc8] sm:$0xff]
    %v932 = vld [vmem:[#allocation12 + $0xd0] sm:$0xff]
    %v933 = vld [vmem:[#allocation12 + $0xd8] sm:$0xff]
    %v934 = vld [vmem:[#allocation12 + $0xe0] sm:$0xff]
    %v935 = vld [vmem:[#allocation12 + $0xe8] sm:$0xff]
    %v936 = vld [vmem:[#allocation12 + $0xf0] sm:$0xff]
    %v937 = vld [vmem:[#allocation12 + $0xf8] sm:$0xff]
    %v970 = vunpack.c.l.b16 %v906
    %v971 = vunpack.c.h.b16 %v906
    %v972 = vunpack.c.l.b16 %v907
    %v973 = vunpack.c.h.b16 %v907
    %v974 = vunpack.c.l.b16 %v908
    %v975 = vunpack.c.h.b16 %v908
    %v976 = vunpack.c.l.b16 %v909
    %v977 = vunpack.c.h.b16 %v909
    %v978 = vunpack.c.l.b16 %v910
    %v979 = vunpack.c.h.b16 %v910
    %v980 = vunpack.c.l.b16 %v911
    %v981 = vunpack.c.h.b16 %v911
    %v982 = vunpack.c.l.b16 %v912
    %v983 = vunpack.c.h.b16 %v912
    %v984 = vunpack.c.l.b16 %v913
    %v985 = vunpack.c.h.b16 %v913
    %v986 = vunpack.c.l.b16 %v914
    %v987 = vunpack.c.h.b16 %v914
    %v988 = vunpack.c.l.b16 %v915
    %v989 = vunpack.c.h.b16 %v915
    %v990 = vunpack.c.l.b16 %v916
    %v991 = vunpack.c.h.b16 %v916
    %v992 = vunpack.c.l.b16 %v917
    %v993 = vunpack.c.h.b16 %v917
    %v994 = vunpack.c.l.b16 %v918
    %v995 = vunpack.c.h.b16 %v918
    %v996 = vunpack.c.l.b16 %v919
    %v997 = vunpack.c.h.b16 %v919
    %v998 = vunpack.c.l.b16 %v920
    %v999 = vunpack.c.h.b16 %v920
    %v1000 = vunpack.c.l.b16 %v921
    %v1001 = vunpack.c.h.b16 %v921
    %v1002 = vunpack.c.l.b16 %v922
    %v1003 = vunpack.c.h.b16 %v922
    %v1004 = vunpack.c.l.b16 %v923
    %v1005 = vunpack.c.h.b16 %v923
    %v1006 = vunpack.c.l.b16 %v924
    %v1007 = vunpack.c.h.b16 %v924
    %v1008 = vunpack.c.l.b16 %v925
    %v1009 = vunpack.c.h.b16 %v925
    %v1010 = vunpack.c.l.b16 %v926
    %v1011 = vunpack.c.h.b16 %v926
    %v1012 = vunpack.c.l.b16 %v927
    %v1013 = vunpack.c.h.b16 %v927
    %v1014 = vunpack.c.l.b16 %v928
    %v1015 = vunpack.c.h.b16 %v928
    %v1016 = vunpack.c.l.b16 %v929
    %v1017 = vunpack.c.h.b16 %v929
    %v1018 = vunpack.c.l.b16 %v930
    %v1019 = vunpack.c.h.b16 %v930
    %v1020 = vunpack.c.l.b16 %v931
    %v1021 = vunpack.c.h.b16 %v931
    %v1022 = vunpack.c.l.b16 %v932
    %v1023 = vunpack.c.h.b16 %v932
    %v1024 = vunpack.c.l.b16 %v933
    %v1025 = vunpack.c.h.b16 %v933
    %v1026 = vunpack.c.l.b16 %v934
    %v1027 = vunpack.c.h.b16 %v934
    %v1028 = vunpack.c.l.b16 %v935
    %v1029 = vunpack.c.h.b16 %v935
    %v1030 = vunpack.c.l.b16 %v936
    %v1031 = vunpack.c.h.b16 %v936
    %v1032 = vunpack.c.l.b16 %v937
    %v1033 = vunpack.c.h.b16 %v937
    %v1034 = vpack.c.b16 %v974, %v970
    %v1035 = vpack.c.b16 %v975, %v971
    %v1036 = vpack.c.b16 %v976, %v972
    %v1037 = vpack.c.b16 %v977, %v973
    %v1038 = vpack.c.b16 %v982, %v978
    %v1039 = vpack.c.b16 %v983, %v979
    %v1040 = vpack.c.b16 %v984, %v980
    %v1041 = vpack.c.b16 %v985, %v981
    %v1042 = vpack.c.b16 %v990, %v986
    %v1043 = vpack.c.b16 %v991, %v987
    %v1044 = vpack.c.b16 %v992, %v988
    %v1045 = vpack.c.b16 %v993, %v989
    %v1046 = vpack.c.b16 %v998, %v994
    %v1047 = vpack.c.b16 %v999, %v995
    %v1048 = vpack.c.b16 %v1000, %v996
    %v1049 = vpack.c.b16 %v1001, %v997
    %v1050 = vpack.c.b16 %v1006, %v1002
    %v1051 = vpack.c.b16 %v1007, %v1003
    %v1052 = vpack.c.b16 %v1008, %v1004
    %v1053 = vpack.c.b16 %v1009, %v1005
    %v1054 = vpack.c.b16 %v1014, %v1010
    %v1055 = vpack.c.b16 %v1015, %v1011
    %v1056 = vpack.c.b16 %v1016, %v1012
    %v1057 = vpack.c.b16 %v1017, %v1013
    %v1058 = vpack.c.b16 %v1022, %v1018
    %v1059 = vpack.c.b16 %v1023, %v1019
    %v1060 = vpack.c.b16 %v1024, %v1020
    %v1061 = vpack.c.b16 %v1025, %v1021
    %v1062 = vpack.c.b16 %v1030, %v1026
    %v1063 = vpack.c.b16 %v1031, %v1027
    %v1064 = vpack.c.b16 %v1032, %v1028
    %v1065 = vpack.c.b16 %v1033, %v1029
    %1098 = vmatpush.bf16.msra.mxu0 %v1062
    %1099 = vmatpush.bf16.msra.mxu0 %v1058
    %1100 = vmatpush.bf16.msra.mxu0 %v1054
    %1101 = vmatpush.bf16.msra.mxu0 %v1050
    %1102 = vmatpush.bf16.msra.mxu0 %v1046
    %1103 = vmatpush.bf16.msra.mxu0 %v1042
    %1104 = vmatpush.bf16.msra.mxu0 %v1038
    %1105 = vmatpush.bf16.msra.mxu0 %v1034
    %1106 = vmatmul.bf16.gmra.mxu0 %v905
    %v1107 = vpop.f32.mrf.mxu0
    %v1108 = vadd.f32 0.0, %v1107
    %v1109 = vpop.f32.mrf.mxu0
    %v1110 = vadd.f32 0.0, %v1109
    %1111 = vdwg.mxu0
    %1112 = vmatpush.bf16.msra.mxu0 %v1063
    %1113 = vmatpush.bf16.msra.mxu0 %v1059
    %1114 = vmatpush.bf16.msra.mxu0 %v1055
    %1115 = vmatpush.bf16.msra.mxu0 %v1051
    %1116 = vmatpush.bf16.msra.mxu0 %v1047
    %1117 = vmatpush.bf16.msra.mxu0 %v1043
    %1118 = vmatpush.bf16.msra.mxu0 %v1039
    %1119 = vmatpush.bf16.msra.mxu0 %v1035
    %1120 = vmatmul.bf16.gmra.mxu0 %v905
    %v1121 = vpop.f32.mrf.mxu0
    %v1122 = vadd.f32 0.0, %v1121
    %v1123 = vpop.f32.mrf.mxu0
    %v1124 = vadd.f32 0.0, %v1123
    %1125 = vdwg.mxu0
    %1126 = vmatpush.bf16.msra.mxu0 %v1064
    %1127 = vmatpush.bf16.msra.mxu0 %v1060
    %1128 = vmatpush.bf16.msra.mxu0 %v1056
    %1129 = vmatpush.bf16.msra.mxu0 %v1052
    %1130 = vmatpush.bf16.msra.mxu0 %v1048
    %1131 = vmatpush.bf16.msra.mxu0 %v1044
    %1132 = vmatpush.bf16.msra.mxu0 %v1040
    %1133 = vmatpush.bf16.msra.mxu0 %v1036
    %1134 = vmatmul.bf16.gmra.mxu0 %v905
    %v1135 = vpop.f32.mrf.mxu0
    %v1136 = vadd.f32 0.0, %v1135
    %v1137 = vpop.f32.mrf.mxu0
    %v1138 = vadd.f32 0.0, %v1137
    %1139 = vdwg.mxu0
    %1140 = vmatpush.bf16.msra.mxu0 %v1065
    %1141 = vmatpush.bf16.msra.mxu0 %v1061
    %1142 = vmatpush.bf16.msra.mxu0 %v1057
    %1143 = vmatpush.bf16.msra.mxu0 %v1053
    %1144 = vmatpush.bf16.msra.mxu0 %v1049
    %1145 = vmatpush.bf16.msra.mxu0 %v1045
    %1146 = vmatpush.bf16.msra.mxu0 %v1041
    %1147 = vmatpush.bf16.msra.mxu0 %v1037
    %1148 = vmatmul.bf16.gmra.mxu0 %v905
    %v1149 = vpop.f32.mrf.mxu0
    %v1150 = vadd.f32 0.0, %v1149
    %v1151 = vpop.f32.mrf.mxu0
    %v1152 = vadd.f32 0.0, %v1151
    %1153 = vdwg.mxu0
    %v1154 = vsub.f32 0.0, %v1108
    %v1155 = vsub.f32 0.0, %v1122
    %v1156 = vsub.f32 0.0, %v1110
    %v1157 = vsub.f32 0.0, %v1124
    %v1158 = vmul.f32 %v1154, 1.442695
    %v1159 = vpow.pop %v1158
    %v1160 = vmul.f32 %v1155, 1.442695
    %v1161 = vpow.pop %v1160
    %v1162 = vmul.f32 %v1156, 1.442695
    %v1163 = vpow.pop %v1162
    %v1164 = vmul.f32 %v1157, 1.442695
    %v1165 = vpow.pop %v1164
    %v1166 = vadd.f32 %v1159, 1.0
    %v1167 = vadd.f32 %v1161, 1.0
    %v1168 = vadd.f32 %v1163, 1.0
    %v1169 = vadd.f32 %v1165, 1.0
    %v1170 = vrcp.pop %v1166
    %v1171 = vrcp.pop %v1167
    %v1172 = vrcp.pop %v1168
    %v1173 = vrcp.pop %v1169
    %v1174 = vmul.f32 %v1108, %v1170
    %v1175 = vmul.f32 %v1122, %v1171
    %v1176 = vmul.f32 %v1110, %v1172
    %v1177 = vmul.f32 %v1124, %v1173
    %v1178 = vmul.f32 %v1174, %v1136
    %v1179 = vmul.f32 %v1175, %v1150
    %v1180 = vmul.f32 %v1176, %v1138
    %v1181 = vmul.f32 %v1177, %v1152
    %v1182 = vpack.c.bf16 %v1180, %v1178
    %v1183 = vpack.c.bf16 %v1181, %v1179
    %v1184 = vld [vmem:[#allocation14] sm:$0xf]
    %v1185 = vld [vmem:[#allocation14 + $0x4] sm:$0xf]
    %v1186 = vld [vmem:[#allocation14 + $0x8] sm:$0xf]
    %v1187 = vld [vmem:[#allocation14 + $0xc] sm:$0xf]
    %v1188 = vld [vmem:[#allocation14 + $0x10] sm:$0xf]
    %v1189 = vld [vmem:[#allocation14 + $0x14] sm:$0xf]
    %v1190 = vld [vmem:[#allocation14 + $0x18] sm:$0xf]
    %v1191 = vld [vmem:[#allocation14 + $0x1c] sm:$0xf]
    %v1192 = vld [vmem:[#allocation14 + $0x20] sm:$0xf]
    %v1193 = vld [vmem:[#allocation14 + $0x24] sm:$0xf]
    %v1194 = vld [vmem:[#allocation14 + $0x28] sm:$0xf]
    %v1195 = vld [vmem:[#allocation14 + $0x2c] sm:$0xf]
    %v1196 = vld [vmem:[#allocation14 + $0x30] sm:$0xf]
    %v1197 = vld [vmem:[#allocation14 + $0x34] sm:$0xf]
    %v1198 = vld [vmem:[#allocation14 + $0x38] sm:$0xf]
    %v1199 = vld [vmem:[#allocation14 + $0x3c] sm:$0xf]
    %v1200 = vld [vmem:[#allocation14 + $0x40] sm:$0xf]
    %v1201 = vld [vmem:[#allocation14 + $0x44] sm:$0xf]
    %v1202 = vld [vmem:[#allocation14 + $0x48] sm:$0xf]
    %v1203 = vld [vmem:[#allocation14 + $0x4c] sm:$0xf]
    %v1204 = vld [vmem:[#allocation14 + $0x50] sm:$0xf]
    %v1205 = vld [vmem:[#allocation14 + $0x54] sm:$0xf]
    %v1206 = vld [vmem:[#allocation14 + $0x58] sm:$0xf]
    %v1207 = vld [vmem:[#allocation14 + $0x5c] sm:$0xf]
    %v1208 = vld [vmem:[#allocation14 + $0x60] sm:$0xf]
    %v1209 = vld [vmem:[#allocation14 + $0x64] sm:$0xf]
    %v1210 = vld [vmem:[#allocation14 + $0x68] sm:$0xf]
    %v1211 = vld [vmem:[#allocation14 + $0x6c] sm:$0xf]
    %v1212 = vld [vmem:[#allocation14 + $0x70] sm:$0xf]
    %v1213 = vld [vmem:[#allocation14 + $0x74] sm:$0xf]
    %v1214 = vld [vmem:[#allocation14 + $0x78] sm:$0xf]
    %v1215 = vld [vmem:[#allocation14 + $0x7c] sm:$0xf]
    %v1248 = vunpack.c.l.b16 %v1184
    %v1249 = vunpack.c.l.b16 %v1185
    %v1250 = vunpack.c.l.b16 %v1186
    %v1251 = vunpack.c.l.b16 %v1187
    %v1252 = vunpack.c.l.b16 %v1188
    %v1253 = vunpack.c.l.b16 %v1189
    %v1254 = vunpack.c.l.b16 %v1190
    %v1255 = vunpack.c.l.b16 %v1191
    %v1256 = vunpack.c.l.b16 %v1192
    %v1257 = vunpack.c.l.b16 %v1193
    %v1258 = vunpack.c.l.b16 %v1194
    %v1259 = vunpack.c.l.b16 %v1195
    %v1260 = vunpack.c.l.b16 %v1196
    %v1261 = vunpack.c.l.b16 %v1197
    %v1262 = vunpack.c.l.b16 %v1198
    %v1263 = vunpack.c.l.b16 %v1199
    %v1264 = vunpack.c.l.b16 %v1200
    %v1265 = vunpack.c.l.b16 %v1201
    %v1266 = vunpack.c.l.b16 %v1202
    %v1267 = vunpack.c.l.b16 %v1203
    %v1268 = vunpack.c.l.b16 %v1204
    %v1269 = vunpack.c.l.b16 %v1205
    %v1270 = vunpack.c.l.b16 %v1206
    %v1271 = vunpack.c.l.b16 %v1207
    %v1272 = vunpack.c.l.b16 %v1208
    %v1273 = vunpack.c.l.b16 %v1209
    %v1274 = vunpack.c.l.b16 %v1210
    %v1275 = vunpack.c.l.b16 %v1211
    %v1276 = vunpack.c.l.b16 %v1212
    %v1277 = vunpack.c.l.b16 %v1213
    %v1278 = vunpack.c.l.b16 %v1214
    %v1279 = vunpack.c.l.b16 %v1215
    %v1280 = vpack.c.b16 %v1249, %v1248
    %v1281 = vpack.c.b16 %v1251, %v1250
    %v1282 = vpack.c.b16 %v1253, %v1252
    %v1283 = vpack.c.b16 %v1255, %v1254
    %v1284 = vpack.c.b16 %v1257, %v1256
    %v1285 = vpack.c.b16 %v1259, %v1258
    %v1286 = vpack.c.b16 %v1261, %v1260
    %v1287 = vpack.c.b16 %v1263, %v1262
    %v1288 = vpack.c.b16 %v1265, %v1264
    %v1289 = vpack.c.b16 %v1267, %v1266
    %v1290 = vpack.c.b16 %v1269, %v1268
    %v1291 = vpack.c.b16 %v1271, %v1270
    %v1292 = vpack.c.b16 %v1273, %v1272
    %v1293 = vpack.c.b16 %v1275, %v1274
    %v1294 = vpack.c.b16 %v1277, %v1276
    %v1295 = vpack.c.b16 %v1279, %v1278
    %1312 = vmatpush.bf16.msra.mxu0 %v1287
    %1313 = vmatpush.bf16.msra.mxu0 %v1286
    %1314 = vmatpush.bf16.msra.mxu0 %v1285
    %1315 = vmatpush.bf16.msra.mxu0 %v1284
    %1316 = vmatpush.bf16.msra.mxu0 %v1283
    %1317 = vmatpush.bf16.msra.mxu0 %v1282
    %1318 = vmatpush.bf16.msra.mxu0 %v1281
    %1319 = vmatpush.bf16.msra.mxu0 %v1280
    %1320 = vmatmul.bf16.gmra.mxu0 %v1182
    %v1321 = vpop.f32.mrf.mxu0
    %v1322 = vadd.f32 0.0, %v1321
    %v1323 = vpop.f32.mrf.mxu0
    %v1324 = vadd.f32 0.0, %v1323
    %1325 = vdwg.mxu0
    %1326 = vmatpush.bf16.msra.mxu0 %v1295
    %1327 = vmatpush.bf16.msra.mxu0 %v1294
    %1328 = vmatpush.bf16.msra.mxu0 %v1293
    %1329 = vmatpush.bf16.msra.mxu0 %v1292
    %1330 = vmatpush.bf16.msra.mxu0 %v1291
    %1331 = vmatpush.bf16.msra.mxu0 %v1290
    %1332 = vmatpush.bf16.msra.mxu0 %v1289
    %1333 = vmatpush.bf16.msra.mxu0 %v1288
    %1334 = vmatmul.bf16.gmra.mxu0 %v1183
    %v1335 = vpop.f32.mrf.mxu0
    %v1336 = vadd.f32 %v1322, %v1335
    %v1337 = vpop.f32.mrf.mxu0
    %v1338 = vadd.f32 %v1324, %v1337
    %1339 = vdwg.mxu0
    %1340 = vst [vmem:[#allocation15] sm:$0xff] %v1336
    %1341 = vst [vmem:[#allocation15 + $0x8] sm:$0xff] %v1338
    // Predicated region
    $region66: #{tpu_custom_call.1} parent=1 // pred_check
      _
    $region67: #{tpu_custom_call.1} parent=1 // pred_check_branch
      %1343 = sbr.rel (0) target = $region69
    $region68: #{tpu_custom_call.1} parent=1 // pred_region
      %1345 = vsyncadd [#allocation5], 0
      %s1346 = sshll.u32 [#allocation15], 4
      %s1347 = int_to_ptr.vmem [resolvable:$true] %s1346
      %s1348 = sshll.u32 %s9, 4
      %s1349 = int_to_ptr.hbm [resolvable:$true] %s1348
      %1354 = dma.vmem_to_hbm [thread:$0]  %s1347, 256, %s1349, [#allocation5], 128, 128, 8
    $region69: #{tpu_custom_call.1} parent=1 // pred_fallthru
      _
    // Predicated region
    $region70: #{tpu_custom_call.1} parent=1 // pred_check
      _
    $region71: #{tpu_custom_call.1} parent=1 // pred_check_branch
      %1356 = sbr.rel (0) target = $region73
    $region72: #{tpu_custom_call.1} parent=1 // pred_region
      %1358 = vsyncadd [#allocation17], 0
      %s1359 = sshll.u32 [#allocation16], 4
      %s1360 = int_to_ptr.vmem [resolvable:$true] %s1359
      %s1361 = sshll.u32 %s10, 4
      %s1362 = int_to_ptr.hbm [resolvable:$true] %s1361
      %1367 = dma.vmem_to_hbm [thread:$0]  %s1360, 256, %s1362, [#allocation17], 128, 128, 8
    $region73: #{tpu_custom_call.1} parent=1 // pred_fallthru
      _
    // Predicated region
    $region74: #{tpu_custom_call.1} parent=1 // pred_check
      _
    $region75: #{tpu_custom_call.1} parent=1 // pred_check_branch
      %1369 = sbr.rel (0) target = $region77
    $region76: #{tpu_custom_call.1} parent=1 // pred_region
      %1371 = dma.done [#allocation5], 256
    $region77: #{tpu_custom_call.1} parent=1 // pred_fallthru
      _
    // Predicated region
    $region78: #{tpu_custom_call.1} parent=1 // pred_check
      _
    $region79: #{tpu_custom_call.1} parent=1 // pred_check_branch
      %1373 = sbr.rel (0) target = $region81
    $region80: #{tpu_custom_call.1} parent=1 // pred_region
      %1375 = dma.done [#allocation17], 256
    $region81: #{tpu_custom_call.1} parent=1 // pred_fallthru
      _
    %1376 = vsyncpa [#allocation4], 1
    %1377 = vsyncpa [#allocation7], 1
    %1378 = vsyncpa [#allocation10], 1
    %1379 = vsyncpa [#allocation13], 1
    %1380 = vsyncpa [#allocation5], 1
    %1381 = vsyncpa [#allocation17], 1

</llo_original>
